<compile_context>
chip_gen: v7x
topology: tpu7x:2x2x1
jax: 0.10.0
libtpu: 0.0.40
codegen_flags: <defaults>
</compile_context>

<pallas_src>
import functools

import jax
import jax.numpy as jnp
import numpy as np
from jax.experimental import pallas as pl
from jax.experimental.pallas import tpu as pltpu


def _round_up(v, m):
    return ((v + m - 1) // m) * m


# -----------------------------------------------------------------------------
# Pallas kernel: one grid step == `block_t` RNN timesteps for one batch block.
# Grid = (batch_blocks, T_pad // block_t); time axis is "arbitrary" (carried).
# -----------------------------------------------------------------------------
def sfm_kernel(wx_ref,        # (Tc, Bc, Gp)   precomputed x@W_all + b_all (padded)
               re_ref,        # (Tc, F, 1)     cos table
               im_ref,        # (Tc, F, 1)     sin table
               u_all_ref,     # (Hp, Gp)       fused recurrent weights (padded)
               ua_ref,        # (F, 1)         U_a weights
               ba_ref,        # (1, Hp)        b_a (padded)
               hout_ref,      # (Tc, Bc, Hp)   output: hidden state per step
               h_scr,         # (Bc, Hp)       carried hidden state
               sre_scr,       # (Bc, F, Hp)    carried Re(S)
               sim_scr,       # (Bc, F, Hp)    carried Im(S)
               *, hidden_pad, freq_dim, block_t):
    Hp = hidden_pad
    F = freq_dim

    # New batch block -> reset carried state.
    @pl.when(pl.program_id(1) == 0)
    def _init():
        h_scr[...] = jnp.zeros_like(h_scr)
        sre_scr[...] = jnp.zeros_like(sre_scr)
        sim_scr[...] = jnp.zeros_like(sim_scr)

    # Loop-invariant loads / broadcasts hoisted out of the timestep loop.
    u_all = u_all_ref[...]                 # (Hp, Gp)
    ua = ua_ref[...][None, :, :]           # (1, F, 1) -> lane/batch broadcast
    ba = ba_ref[...]                       # (1, Hp)
    wdt = u_all.dtype

    def step(s, carry):
        h = h_scr[...]                                         # (Bc, Hp)
        # Single fused recurrent matmul + precomputed input projection.
        z = wx_ref[s] + jnp.dot(h.astype(wdt), u_all,
                                preferred_element_type=jnp.float32)  # (Bc, Gp)

        # All gate slices start/end on 128-lane boundaries (Hp % 128 == 0).
        i_g = jax.nn.sigmoid(z[:, 0 * Hp:1 * Hp])              # (Bc, Hp)
        ste = jax.nn.sigmoid(z[:, 1 * Hp:2 * Hp])              # (Bc, Hp)
        c = i_g * jnp.tanh(z[:, 2 * Hp:3 * Hp])                # (Bc, Hp)
        o_g = jax.nn.sigmoid(z[:, 3 * Hp:4 * Hp])              # (Bc, Hp)
        fre = jax.nn.sigmoid(z[:, 4 * Hp:4 * Hp + F])          # (Bc, F)

        # Frequency-state update in (Bc, F, Hp) layout (lane dim = Hp).
        # TODO(synk): fre is produced lane-major and consumed sublane-major;
        # the lane->sublane relayout rides the XLU slot (acceptable per review).
        f_gate = ste[:, None, :] * fre[:, :, None]             # (Bc, F, Hp)
        c_b = c[:, None, :]                                    # (Bc, 1, Hp)
        re_t = re_ref[s][None]                                 # (1, F, 1)
        im_t = im_ref[s][None]                                 # (1, F, 1)

        s_re = f_gate * sre_scr[...] + c_b * re_t              # (Bc, F, Hp)
        s_im = f_gate * sim_scr[...] + c_b * im_t              # (Bc, F, Hp)
        sre_scr[...] = s_re
        sim_scr[...] = s_im

        amp = jnp.sqrt(s_re * s_re + s_im * s_im)              # (Bc, F, Hp)
        a_a = jnp.tanh(jnp.sum(amp * ua, axis=1) + ba)         # (Bc, Hp)

        h_new = o_g * a_a                                      # (Bc, Hp)
        h_scr[...] = h_new
        hout_ref[s] = h_new.astype(hout_ref.dtype)             # lane-dense store
        return carry

    jax.lax.fori_loop(0, block_t, step, 0, unroll=min(block_t, 8))


# -----------------------------------------------------------------------------
# Wrapper
# -----------------------------------------------------------------------------
@functools.partial(jax.jit,
                   static_argnames=("block_t", "batch_blocks", "recurrent_dtype"))
def sfm_forward(x, params, *, block_t=16, batch_blocks=1,
                recurrent_dtype=jnp.float32):
    """x: (B, seq, input_dim) float32 -> (B, seq, output_dim) float32."""
    B, T, D = x.shape
    H = params["U_i"].shape[0]
    F = params["U_fre"].shape[1]
    O = params["W_p"].shape[1]

    # Lane-aligned gate blocks.
    Hp = _round_up(H, 128)
    Fp = _round_up(F, 128)
    Gp = 4 * Hp + Fp

    assert B % batch_blocks == 0, "batch_blocks must divide batch"
    Bc = B // batch_blocks
    # Keep the per-core batch block sublane-friendly (or the full batch).
    assert Bc == B or Bc % 8 == 0, "per-core batch block must be full B or %8==0"

    def pad_last(a, target):
        return jnp.pad(a, [(0, 0)] * (a.ndim - 1) + [(0, target - a.shape[-1])])

    # --- Fused, lane-padded weights (column order must match kernel slicing) --
    W_all = jnp.concatenate(
        [pad_last(params["W_i"], Hp), pad_last(params["W_ste"], Hp),
         pad_last(params["W_c"], Hp), pad_last(params["W_o"], Hp),
         pad_last(params["W_fre"], Fp)], axis=1)                        # (D, Gp)
    b_all = jnp.concatenate(
        [pad_last(params["b_i"], Hp), pad_last(params["b_ste"], Hp),
         pad_last(params["b_c"], Hp), pad_last(params["b_o"], Hp),
         pad_last(params["b_fre"], Fp)], axis=1)                        # (1, Gp)
    U_all = jnp.concatenate(
        [pad_last(params["U_i"], Hp), pad_last(params["U_ste"], Hp),
         pad_last(params["U_c"], Hp), pad_last(params["U_o"], Hp),
         pad_last(params["U_fre"], Fp)], axis=1)                        # (H, Gp)
    U_all = jnp.pad(U_all, ((0, Hp - H), (0, 0))).astype(recurrent_dtype)  # (Hp, Gp)

    b_a = pad_last(params["b_a"], Hp)                                   # (1, Hp)
    u_a = params["U_a"].reshape(F, 1)                                   # (F, 1)

    # --- Hoisted input projection (time-major) --------------------------------
    x_t = jnp.transpose(x, (1, 0, 2))                                   # (T, B, D)
    wx = (x_t.reshape(T * B, D) @ W_all + b_all).reshape(T, B, Gp)

    # Pad the time axis to a multiple of block_t (padded steps run after all
    # real steps and are dropped; they cannot affect real outputs).
    T_pad = _round_up(T, block_t)
    if T_pad != T:
        wx = jnp.pad(wx, ((0, T_pad - T), (0, 0), (0, 0)))

    # --- Precomputed trig tables, streamed as (T, F, 1) -----------------------
    time_t = jnp.arange(1, T_pad + 1, dtype=jnp.float32)                # (T_pad,)
    freq = jnp.arange(F, dtype=jnp.float32)                             # (F,)
    omega = (2.0 * np.pi) * time_t[:, None] * freq[None, :]             # (T_pad, F)
    re_tab = jnp.cos(omega)[:, :, None]                                 # (T_pad, F, 1)
    im_tab = jnp.sin(omega)[:, :, None]                                 # (T_pad, F, 1)

    kernel = functools.partial(sfm_kernel, hidden_pad=Hp, freq_dim=F,
                               block_t=block_t)

    # --- Static VMEM budget (double-buffered blocks + invariants + scratch) ---
    def r8(v):
        return _round_up(v, 8)
    blk_bytes = 4 * (block_t * r8(Bc) * Gp          # wx block
                     + 2 * block_t * r8(F) * 128    # trig blocks (lane-padded)
                     + block_t * r8(Bc) * Hp)       # out block
    inv_bytes = 4 * (Hp * Gp + r8(F) * 128 + 8 * Hp)
    scr_bytes = 4 * (r8(Bc) * Hp + 2 * r8(Bc) * r8(F) * Hp)
    est = 2 * blk_bytes + 2 * inv_bytes + scr_bytes
    vmem_limit = max(32 * 1024 * 1024, min(int(2.5 * est), 56 * 1024 * 1024))

    grid = (batch_blocks, T_pad // block_t)

    h_seq = pl.pallas_call(
        kernel,
        out_shape=jax.ShapeDtypeStruct((T_pad, B, Hp), jnp.float32),
        grid_spec=pltpu.PrefetchScalarGridSpec(
            num_scalar_prefetch=0,
            grid=grid,
            in_specs=[
                pl.BlockSpec((block_t, Bc, Gp), lambda b, t: (t, b, 0)),   # wx
                pl.BlockSpec((block_t, F, 1), lambda b, t: (t, 0, 0)),     # cos
                pl.BlockSpec((block_t, F, 1), lambda b, t: (t, 0, 0)),     # sin
                pl.BlockSpec((Hp, Gp), lambda b, t: (0, 0)),               # U_all
                pl.BlockSpec((F, 1), lambda b, t: (0, 0)),                 # U_a
                pl.BlockSpec((1, Hp), lambda b, t: (0, 0)),                # b_a
            ],
            out_specs=pl.BlockSpec((block_t, Bc, Hp), lambda b, t: (t, b, 0)),
            scratch_shapes=[
                pltpu.VMEM((Bc, Hp), jnp.float32),       # h
                pltpu.VMEM((Bc, F, Hp), jnp.float32),    # S_re
                pltpu.VMEM((Bc, F, Hp), jnp.float32),    # S_im
            ],
        ),
        compiler_params=pltpu.CompilerParams(
            # batch blocks are independent (v7x megacore); time is the carried
            # recurrence.
            dimension_semantics=("parallel", "arbitrary"),
            vmem_limit_bytes=vmem_limit,
        ),
    )(wx, re_tab, im_tab, U_all, u_a, b_a)

    # --- Hoisted output projection (fused bias) --------------------------------
    h_flat = h_seq[:T, :, :H].reshape(T * B, H)
    p = h_flat @ params["W_p"] + (params["b_Wp"] + params["b_p"])
    return jnp.transpose(p.reshape(T, B, O), (1, 0, 2))                  # (B, T, O)


# -----------------------------------------------------------------------------
# Deterministic parameter construction (mirrors SFMCell.__init__ shapes)
# -----------------------------------------------------------------------------
def init_params(key, input_dim, hidden_dim, freq_dim, output_dim):
    ks = iter(jax.random.split(key, 32))

    def linear(in_d, out_d, bias=True):
        bound = 1.0 / np.sqrt(in_d)
        w = jax.random.uniform(next(ks), (in_d, out_d), jnp.float32, -bound, bound)
        if bias:
            b = jax.random.uniform(next(ks), (1, out_d), jnp.float32, -bound, bound)
            return w, b
        return w

    p = {}
    p["W_i"], p["b_i"] = linear(input_dim, hidden_dim)
    p["U_i"] = linear(hidden_dim, hidden_dim, bias=False)
    p["W_ste"], p["b_ste"] = linear(input_dim, hidden_dim)
    p["U_ste"] = linear(hidden_dim, hidden_dim, bias=False)
    p["W_fre"], p["b_fre"] = linear(input_dim, freq_dim)
    p["U_fre"] = linear(hidden_dim, freq_dim, bias=False)
    p["W_c"], p["b_c"] = linear(input_dim, hidden_dim)
    p["U_c"] = linear(hidden_dim, hidden_dim, bias=False)
    p["W_o"], p["b_o"] = linear(input_dim, hidden_dim)
    p["U_o"] = linear(hidden_dim, hidden_dim, bias=False)
    # U_a: Linear(freq_dim, 1, bias=False) -> store as a (1, F) row
    p["U_a"] = linear(freq_dim, 1, bias=False).reshape(1, freq_dim)
    p["b_a"] = jnp.zeros((1, hidden_dim), jnp.float32)
    p["W_p"], p["b_Wp"] = linear(hidden_dim, output_dim)
    p["b_p"] = jnp.zeros((1, output_dim), jnp.float32)
    return p


# -----------------------------------------------------------------------------
# Pure-JAX reference (mirrors the PyTorch forward) for a correctness check
# -----------------------------------------------------------------------------
def sfm_reference(x, p):
    B, T, D = x.shape
    H = p["U_i"].shape[0]
    F = p["U_fre"].shape[1]
    h = jnp.zeros((B, H))
    S_re = jnp.zeros((B, H, F))
    S_im = jnp.zeros((B, H, F))
    time = jnp.zeros((B,))
    outs = []
    for t in range(T):
        xt = x[:, t, :]
        time = time + 1.0
        i = jax.nn.sigmoid(xt @ p["W_i"] + p["b_i"] + h @ p["U_i"])
        ste = jax.nn.sigmoid(xt @ p["W_ste"] + p["b_ste"] + h @ p["U_ste"])
        fre = jax.nn.sigmoid(xt @ p["W_fre"] + p["b_fre"] + h @ p["U_fre"])
        f = ste[:, :, None] * fre[:, None, :]
        c = i * jnp.tanh(xt @ p["W_c"] + p["b_c"] + h @ p["U_c"])
        omega = 2 * np.pi * time[:, None, None] * jnp.arange(F, dtype=jnp.float32)[None, :]
        re = jnp.cos(omega).reshape(B, 1, F)
        im = jnp.sin(omega).reshape(B, 1, F)
        S_re = f * S_re + c[:, :, None] * re
        S_im = f * S_im + c[:, :, None] * im
        A = jnp.sqrt(S_re ** 2 + S_im ** 2)
        A_a = jnp.tanh(jnp.sum(A * p["U_a"].reshape(1, 1, F), axis=-1) + p["b_a"])
        o = jax.nn.sigmoid(xt @ p["W_o"] + p["b_o"] + h @ p["U_o"])
        h = o * A_a
        pt = h @ p["W_p"] + p["b_Wp"] + p["b_p"]
        outs.append(pt)
    return jnp.stack(outs, axis=1)


if __name__ == "__main__":
    # Small, module-consistent shapes.
    batch, seq_len = 2, 8
    input_dim, hidden_dim, freq_dim, output_dim = 4, 32, 8, 16

    key = jax.random.PRNGKey(0)
    kx, kp = jax.random.split(key)
    x = jax.random.normal(kx, (batch, seq_len, input_dim), jnp.float32)
    params = init_params(kp, input_dim, hidden_dim, freq_dim, output_dim)

    # block_t=4 -> time grid of 2 so the VMEM-carried state crosses grid steps.
    out = sfm_forward(x, params, block_t=4, batch_blocks=1)
    out = jax.block_until_ready(out)
    assert out.shape == (batch, seq_len, output_dim), out.shape

    ref = jax.block_until_ready(sfm_reference(x, params))
    max_err = float(jnp.max(jnp.abs(out - ref)))
    assert max_err < 1e-4, f"mismatch vs reference: {max_err}"

    print("KERNEL_OK")
</pallas_src>

<mosaic_0001>
module attributes {stable_mosaic.version = 11 : i64} {
  func.func @sfm_kernel(%arg0: i32, %arg1: i32, %arg2: memref<4x2x640xf32, #tpu.memory_space<vmem>>, %arg3: memref<4x8x1xf32, #tpu.memory_space<vmem>>, %arg4: memref<4x8x1xf32, #tpu.memory_space<vmem>>, %arg5: memref<128x640xf32, #tpu.memory_space<vmem>>, %arg6: memref<8x1xf32, #tpu.memory_space<vmem>>, %arg7: memref<1x128xf32, #tpu.memory_space<vmem>>, %arg8: memref<4x2x128xf32, #tpu.memory_space<vmem>>, %arg9: memref<2x128xf32, #tpu.memory_space<vmem>>, %arg10: memref<2x8x128xf32, #tpu.memory_space<vmem>>, %arg11: memref<2x8x128xf32, #tpu.memory_space<vmem>>) attributes {dimension_semantics = [#tpu.dimension_semantics<parallel>, #tpu.dimension_semantics<arbitrary>], iteration_bounds = array<i64: 1, 2>, scalar_prefetch = 0 : i64, scratch_operands = 3 : i64, tpu.core_type = #tpu.core_type<tc>, window_params = [{transform_indices = @transform_0, window_bounds = array<i64: 4, 2, 640>}, {transform_indices = @transform_1, window_bounds = array<i64: 4, 8, 1>}, {transform_indices = @transform_2, window_bounds = array<i64: 4, 8, 1>}, {pipeline_mode = #tpu.pipeline_mode<synchronous>, transform_indices = @transform_3, window_bounds = array<i64: 128, 640>}, {pipeline_mode = #tpu.pipeline_mode<synchronous>, transform_indices = @transform_4, window_bounds = array<i64: 8, 1>}, {pipeline_mode = #tpu.pipeline_mode<synchronous>, transform_indices = @transform_5, window_bounds = array<i64: 1, 128>}, {transform_indices = @transform_6, window_bounds = array<i64: 4, 2, 128>}]} {
    %c0_i32 = arith.constant 0 : i32
    %0 = arith.cmpi eq, %arg1, %c0_i32 : i32
    %1 = arith.extui %0 : i1 to i32
    %c0_i32_0 = arith.constant 0 : i32
    %2 = arith.cmpi ne, %1, %c0_i32_0 : i32
    scf.if %2 {
      %cst_126 = arith.constant 0.000000e+00 : f32
      %315 = vector.broadcast %cst_126 : f32 to vector<2x128xf32>
      %c0_127 = arith.constant 0 : index
      %c0_128 = arith.constant 0 : index
      %316 = vector.load %arg9[%c0_127, %c0_128] : memref<2x128xf32, #tpu.memory_space<vmem>>, vector<2x128xf32>
      tpu.vector_store %arg9[%c0_127, %c0_128], %315 {strides = array<i32>} : memref<2x128xf32, #tpu.memory_space<vmem>>, vector<2x128xf32>,
      %cst_129 = arith.constant 0.000000e+00 : f32
      %317 = vector.broadcast %cst_129 : f32 to vector<2x8x128xf32>
      %c0_130 = arith.constant 0 : index
      %c0_131 = arith.constant 0 : index
      %c0_132 = arith.constant 0 : index
      %318 = vector.load %arg10[%c0_130, %c0_131, %c0_132] : memref<2x8x128xf32, #tpu.memory_space<vmem>>, vector<2x8x128xf32>
      tpu.vector_store %arg10[%c0_130, %c0_131, %c0_132], %317 {strides = array<i32>} : memref<2x8x128xf32, #tpu.memory_space<vmem>>, vector<2x8x128xf32>,
      %cst_133 = arith.constant 0.000000e+00 : f32
      %319 = vector.broadcast %cst_133 : f32 to vector<2x8x128xf32>
      %c0_134 = arith.constant 0 : index
      %c0_135 = arith.constant 0 : index
      %c0_136 = arith.constant 0 : index
      %320 = vector.load %arg11[%c0_134, %c0_135, %c0_136] : memref<2x8x128xf32, #tpu.memory_space<vmem>>, vector<2x8x128xf32>
      tpu.vector_store %arg11[%c0_134, %c0_135, %c0_136], %319 {strides = array<i32>} : memref<2x8x128xf32, #tpu.memory_space<vmem>>, vector<2x8x128xf32>,
    } else {
    }
    %c0 = arith.constant 0 : index
    %c0_1 = arith.constant 0 : index
    %3 = vector.load %arg5[%c0, %c0_1] : memref<128x640xf32, #tpu.memory_space<vmem>>, vector<128x640xf32>
    %c0_2 = arith.constant 0 : index
    %c0_3 = arith.constant 0 : index
    %4 = vector.load %arg6[%c0_2, %c0_3] : memref<8x1xf32, #tpu.memory_space<vmem>>, vector<8x1xf32>
    %5 = vector.shape_cast %4 : vector<8x1xf32> to vector<1x8x1xf32>
    %c0_4 = arith.constant 0 : index
    %c0_5 = arith.constant 0 : index
    %6 = vector.load %arg7[%c0_4, %c0_5] : memref<1x128xf32, #tpu.memory_space<vmem>>, vector<1x128xf32>
    %c0_i32_6 = arith.constant 0 : i32
    %c0_7 = arith.constant 0 : index
    %c0_8 = arith.constant 0 : index
    %7 = vector.load %arg9[%c0_7, %c0_8] : memref<2x128xf32, #tpu.memory_space<vmem>>, vector<2x128xf32>
    %8 = arith.index_cast %c0_i32_6 : i32 to index
    %c0_9 = arith.constant 0 : index
    %c0_10 = arith.constant 0 : index
    %9 = vector.load %arg2[%8, %c0_9, %c0_10] : memref<4x2x640xf32, #tpu.memory_space<vmem>>, vector<1x2x640xf32>
    %10 = vector.shape_cast %9 : vector<1x2x640xf32> to vector<2x640xf32>
    %cst = arith.constant dense<0.000000e+00> : vector<2x640xf32>
    %11 = tpu.matmul %7, %3, %cst {dimension_numbers = #tpu.dot_dimension_numbers<[1], [0], [0], [1], [0, 0, 1, 1], [], []>} : vector<2x128xf32>, vector<128x640xf32>, vector<2x640xf32> -> vector<2x640xf32>
    %12 = arith.addf %10, %11 : vector<2x640xf32>
    %13 = vector.extract_strided_slice %12 {offsets = [0, 0], sizes = [2, 128], strides = [1, 1]} : vector<2x640xf32> to vector<2x128xf32>
    %14 = arith.negf %13 : vector<2x128xf32>
    %15 = math.exp %14 : vector<2x128xf32>
    %cst_11 = arith.constant 1.000000e+00 : f32
    %16 = vector.broadcast %cst_11 : f32 to vector<2x128xf32>
    %17 = arith.addf %16, %15 : vector<2x128xf32>
    %18 = arith.divf %16, %17 : vector<2x128xf32>
    %19 = vector.extract_strided_slice %12 {offsets = [0, 128], sizes = [2, 128], strides = [1, 1]} : vector<2x640xf32> to vector<2x128xf32>
    %20 = arith.negf %19 : vector<2x128xf32>
    %21 = math.exp %20 : vector<2x128xf32>
    %cst_12 = arith.constant 1.000000e+00 : f32
    %22 = vector.broadcast %cst_12 : f32 to vector<2x128xf32>
    %23 = arith.addf %22, %21 : vector<2x128xf32>
    %24 = arith.divf %22, %23 : vector<2x128xf32>
    %25 = vector.extract_strided_slice %12 {offsets = [0, 256], sizes = [2, 128], strides = [1, 1]} : vector<2x640xf32> to vector<2x128xf32>
    %26 = math.tanh %25 : vector<2x128xf32>
    %27 = arith.mulf %18, %26 : vector<2x128xf32>
    %28 = vector.extract_strided_slice %12 {offsets = [0, 384], sizes = [2, 128], strides = [1, 1]} : vector<2x640xf32> to vector<2x128xf32>
    %29 = arith.negf %28 : vector<2x128xf32>
    %30 = math.exp %29 : vector<2x128xf32>
    %cst_13 = arith.constant 1.000000e+00 : f32
    %31 = vector.broadcast %cst_13 : f32 to vector<2x128xf32>
    %32 = arith.addf %31, %30 : vector<2x128xf32>
    %33 = arith.divf %31, %32 : vector<2x128xf32>
    %34 = vector.extract_strided_slice %12 {offsets = [0, 512], sizes = [2, 8], strides = [1, 1]} : vector<2x640xf32> to vector<2x8xf32>
    %35 = arith.negf %34 : vector<2x8xf32>
    %36 = math.exp %35 : vector<2x8xf32>
    %cst_14 = arith.constant 1.000000e+00 : f32
    %37 = vector.broadcast %cst_14 : f32 to vector<2x8xf32>
    %38 = arith.addf %37, %36 : vector<2x8xf32>
    %39 = arith.divf %37, %38 : vector<2x8xf32>
    %40 = vector.shape_cast %24 : vector<2x128xf32> to vector<2x1x128xf32>
    %41 = vector.shape_cast %39 : vector<2x8xf32> to vector<2x8x1xf32>
    %42 = vector.broadcast %40 : vector<2x1x128xf32> to vector<2x8x128xf32>
    %43 = vector.broadcast %41 : vector<2x8x1xf32> to vector<2x8x128xf32>
    %44 = arith.mulf %42, %43 : vector<2x8x128xf32>
    %45 = vector.shape_cast %27 : vector<2x128xf32> to vector<2x1x128xf32>
    %46 = arith.index_cast %c0_i32_6 : i32 to index
    %c0_15 = arith.constant 0 : index
    %c0_16 = arith.constant 0 : index
    %47 = vector.load %arg3[%46, %c0_15, %c0_16] : memref<4x8x1xf32, #tpu.memory_space<vmem>>, vector<1x8x1xf32>
    %48 = vector.shape_cast %47 : vector<1x8x1xf32> to vector<8x1xf32>
    %49 = vector.shape_cast %48 : vector<8x1xf32> to vector<1x8x1xf32>
    %50 = arith.index_cast %c0_i32_6 : i32 to index
    %c0_17 = arith.constant 0 : index
    %c0_18 = arith.constant 0 : index
    %51 = vector.load %arg4[%50, %c0_17, %c0_18] : memref<4x8x1xf32, #tpu.memory_space<vmem>>, vector<1x8x1xf32>
    %52 = vector.shape_cast %51 : vector<1x8x1xf32> to vector<8x1xf32>
    %53 = vector.shape_cast %52 : vector<8x1xf32> to vector<1x8x1xf32>
    %c0_19 = arith.constant 0 : index
    %c0_20 = arith.constant 0 : index
    %c0_21 = arith.constant 0 : index
    %54 = vector.load %arg10[%c0_19, %c0_20, %c0_21] : memref<2x8x128xf32, #tpu.memory_space<vmem>>, vector<2x8x128xf32>
    %55 = arith.mulf %44, %54 : vector<2x8x128xf32>
    %56 = vector.broadcast %45 : vector<2x1x128xf32> to vector<2x8x128xf32>
    %57 = vector.broadcast %49 : vector<1x8x1xf32> to vector<2x8x128xf32>
    %58 = arith.mulf %56, %57 : vector<2x8x128xf32>
    %59 = arith.addf %55, %58 : vector<2x8x128xf32>
    %c0_22 = arith.constant 0 : index
    %c0_23 = arith.constant 0 : index
    %c0_24 = arith.constant 0 : index
    %60 = vector.load %arg11[%c0_22, %c0_23, %c0_24] : memref<2x8x128xf32, #tpu.memory_space<vmem>>, vector<2x8x128xf32>
    %61 = arith.mulf %44, %60 : vector<2x8x128xf32>
    %62 = vector.broadcast %45 : vector<2x1x128xf32> to vector<2x8x128xf32>
    %63 = vector.broadcast %53 : vector<1x8x1xf32> to vector<2x8x128xf32>
    %64 = arith.mulf %62, %63 : vector<2x8x128xf32>
    %65 = arith.addf %61, %64 : vector<2x8x128xf32>
    %c0_25 = arith.constant 0 : index
    %c0_26 = arith.constant 0 : index
    %c0_27 = arith.constant 0 : index
    %66 = vector.load %arg10[%c0_25, %c0_26, %c0_27] : memref<2x8x128xf32, #tpu.memory_space<vmem>>, vector<2x8x128xf32>
    tpu.vector_store %arg10[%c0_25, %c0_26, %c0_27], %59 {strides = array<i32>} : memref<2x8x128xf32, #tpu.memory_space<vmem>>, vector<2x8x128xf32>,
    %c0_28 = arith.constant 0 : index
    %c0_29 = arith.constant 0 : index
    %c0_30 = arith.constant 0 : index
    %67 = vector.load %arg11[%c0_28, %c0_29, %c0_30] : memref<2x8x128xf32, #tpu.memory_space<vmem>>, vector<2x8x128xf32>
    tpu.vector_store %arg11[%c0_28, %c0_29, %c0_30], %65 {strides = array<i32>} : memref<2x8x128xf32, #tpu.memory_space<vmem>>, vector<2x8x128xf32>,
    %68 = arith.mulf %59, %59 : vector<2x8x128xf32>
    %69 = arith.mulf %65, %65 : vector<2x8x128xf32>
    %70 = arith.addf %68, %69 : vector<2x8x128xf32>
    %71 = math.sqrt %70 : vector<2x8x128xf32>
    %72 = vector.broadcast %5 : vector<1x8x1xf32> to vector<2x8x128xf32>
    %73 = arith.mulf %71, %72 : vector<2x8x128xf32>
    %cst_31 = arith.constant dense<0.000000e+00> : vector<2x128xf32>
    %74 = vector.multi_reduction <add>, %73, %cst_31 [1] : vector<2x8x128xf32> to vector<2x128xf32>
    %75 = vector.broadcast %6 : vector<1x128xf32> to vector<2x128xf32>
    %76 = arith.addf %74, %75 : vector<2x128xf32>
    %77 = math.tanh %76 : vector<2x128xf32>
    %78 = arith.mulf %33, %77 : vector<2x128xf32>
    %c0_32 = arith.constant 0 : index
    %c0_33 = arith.constant 0 : index
    %79 = vector.load %arg9[%c0_32, %c0_33] : memref<2x128xf32, #tpu.memory_space<vmem>>, vector<2x128xf32>
    tpu.vector_store %arg9[%c0_32, %c0_33], %78 {strides = array<i32>} : memref<2x128xf32, #tpu.memory_space<vmem>>, vector<2x128xf32>,
    %80 = arith.index_cast %c0_i32_6 : i32 to index
    %c0_34 = arith.constant 0 : index
    %c0_35 = arith.constant 0 : index
    %81 = vector.load %arg8[%80, %c0_34, %c0_35] : memref<4x2x128xf32, #tpu.memory_space<vmem>>, vector<1x2x128xf32>
    %82 = vector.shape_cast %81 : vector<1x2x128xf32> to vector<2x128xf32>
    %83 = vector.shape_cast %78 : vector<2x128xf32> to vector<1x2x128xf32>
    tpu.vector_store %arg8[%80, %c0_34, %c0_35], %83 {strides = array<i32>} : memref<4x2x128xf32, #tpu.memory_space<vmem>>, vector<1x2x128xf32>,
    %c1_i32 = arith.constant 1 : i32
    %c0_36 = arith.constant 0 : index
    %c0_37 = arith.constant 0 : index
    %84 = vector.load %arg9[%c0_36, %c0_37] : memref<2x128xf32, #tpu.memory_space<vmem>>, vector<2x128xf32>
    %85 = arith.index_cast %c1_i32 : i32 to index
    %c0_38 = arith.constant 0 : index
    %c0_39 = arith.constant 0 : index
    %86 = vector.load %arg2[%85, %c0_38, %c0_39] : memref<4x2x640xf32, #tpu.memory_space<vmem>>, vector<1x2x640xf32>
    %87 = vector.shape_cast %86 : vector<1x2x640xf32> to vector<2x640xf32>
    %cst_40 = arith.constant dense<0.000000e+00> : vector<2x640xf32>
    %88 = tpu.matmul %84, %3, %cst_40 {dimension_numbers = #tpu.dot_dimension_numbers<[1], [0], [0], [1], [0, 0, 1, 1], [], []>} : vector<2x128xf32>, vector<128x640xf32>, vector<2x640xf32> -> vector<2x640xf32>
    %89 = arith.addf %87, %88 : vector<2x640xf32>
    %90 = vector.extract_strided_slice %89 {offsets = [0, 0], sizes = [2, 128], strides = [1, 1]} : vector<2x640xf32> to vector<2x128xf32>
    %91 = arith.negf %90 : vector<2x128xf32>
    %92 = math.exp %91 : vector<2x128xf32>
    %cst_41 = arith.constant 1.000000e+00 : f32
    %93 = vector.broadcast %cst_41 : f32 to vector<2x128xf32>
    %94 = arith.addf %93, %92 : vector<2x128xf32>
    %95 = arith.divf %93, %94 : vector<2x128xf32>
    %96 = vector.extract_strided_slice %89 {offsets = [0, 128], sizes = [2, 128], strides = [1, 1]} : vector<2x640xf32> to vector<2x128xf32>
    %97 = arith.negf %96 : vector<2x128xf32>
    %98 = math.exp %97 : vector<2x128xf32>
    %cst_42 = arith.constant 1.000000e+00 : f32
    %99 = vector.broadcast %cst_42 : f32 to vector<2x128xf32>
    %100 = arith.addf %99, %98 : vector<2x128xf32>
    %101 = arith.divf %99, %100 : vector<2x128xf32>
    %102 = vector.extract_strided_slice %89 {offsets = [0, 256], sizes = [2, 128], strides = [1, 1]} : vector<2x640xf32> to vector<2x128xf32>
    %103 = math.tanh %102 : vector<2x128xf32>
    %104 = arith.mulf %95, %103 : vector<2x128xf32>
    %105 = vector.extract_strided_slice %89 {offsets = [0, 384], sizes = [2, 128], strides = [1, 1]} : vector<2x640xf32> to vector<2x128xf32>
    %106 = arith.negf %105 : vector<2x128xf32>
    %107 = math.exp %106 : vector<2x128xf32>
    %cst_43 = arith.constant 1.000000e+00 : f32
    %108 = vector.broadcast %cst_43 : f32 to vector<2x128xf32>
    %109 = arith.addf %108, %107 : vector<2x128xf32>
    %110 = arith.divf %108, %109 : vector<2x128xf32>
    %111 = vector.extract_strided_slice %89 {offsets = [0, 512], sizes = [2, 8], strides = [1, 1]} : vector<2x640xf32> to vector<2x8xf32>
    %112 = arith.negf %111 : vector<2x8xf32>
    %113 = math.exp %112 : vector<2x8xf32>
    %cst_44 = arith.constant 1.000000e+00 : f32
    %114 = vector.broadcast %cst_44 : f32 to vector<2x8xf32>
    %115 = arith.addf %114, %113 : vector<2x8xf32>
    %116 = arith.divf %114, %115 : vector<2x8xf32>
    %117 = vector.shape_cast %101 : vector<2x128xf32> to vector<2x1x128xf32>
    %118 = vector.shape_cast %116 : vector<2x8xf32> to vector<2x8x1xf32>
    %119 = vector.broadcast %117 : vector<2x1x128xf32> to vector<2x8x128xf32>
    %120 = vector.broadcast %118 : vector<2x8x1xf32> to vector<2x8x128xf32>
    %121 = arith.mulf %119, %120 : vector<2x8x128xf32>
    %122 = vector.shape_cast %104 : vector<2x128xf32> to vector<2x1x128xf32>
    %123 = arith.index_cast %c1_i32 : i32 to index
    %c0_45 = arith.constant 0 : index
    %c0_46 = arith.constant 0 : index
    %124 = vector.load %arg3[%123, %c0_45, %c0_46] : memref<4x8x1xf32, #tpu.memory_space<vmem>>, vector<1x8x1xf32>
    %125 = vector.shape_cast %124 : vector<1x8x1xf32> to vector<8x1xf32>
    %126 = vector.shape_cast %125 : vector<8x1xf32> to vector<1x8x1xf32>
    %127 = arith.index_cast %c1_i32 : i32 to index
    %c0_47 = arith.constant 0 : index
    %c0_48 = arith.constant 0 : index
    %128 = vector.load %arg4[%127, %c0_47, %c0_48] : memref<4x8x1xf32, #tpu.memory_space<vmem>>, vector<1x8x1xf32>
    %129 = vector.shape_cast %128 : vector<1x8x1xf32> to vector<8x1xf32>
    %130 = vector.shape_cast %129 : vector<8x1xf32> to vector<1x8x1xf32>
    %c0_49 = arith.constant 0 : index
    %c0_50 = arith.constant 0 : index
    %c0_51 = arith.constant 0 : index
    %131 = vector.load %arg10[%c0_49, %c0_50, %c0_51] : memref<2x8x128xf32, #tpu.memory_space<vmem>>, vector<2x8x128xf32>
    %132 = arith.mulf %121, %131 : vector<2x8x128xf32>
    %133 = vector.broadcast %122 : vector<2x1x128xf32> to vector<2x8x128xf32>
    %134 = vector.broadcast %126 : vector<1x8x1xf32> to vector<2x8x128xf32>
    %135 = arith.mulf %133, %134 : vector<2x8x128xf32>
    %136 = arith.addf %132, %135 : vector<2x8x128xf32>
    %c0_52 = arith.constant 0 : index
    %c0_53 = arith.constant 0 : index
    %c0_54 = arith.constant 0 : index
    %137 = vector.load %arg11[%c0_52, %c0_53, %c0_54] : memref<2x8x128xf32, #tpu.memory_space<vmem>>, vector<2x8x128xf32>
    %138 = arith.mulf %121, %137 : vector<2x8x128xf32>
    %139 = vector.broadcast %122 : vector<2x1x128xf32> to vector<2x8x128xf32>
    %140 = vector.broadcast %130 : vector<1x8x1xf32> to vector<2x8x128xf32>
    %141 = arith.mulf %139, %140 : vector<2x8x128xf32>
    %142 = arith.addf %138, %141 : vector<2x8x128xf32>
    %c0_55 = arith.constant 0 : index
    %c0_56 = arith.constant 0 : index
    %c0_57 = arith.constant 0 : index
    %143 = vector.load %arg10[%c0_55, %c0_56, %c0_57] : memref<2x8x128xf32, #tpu.memory_space<vmem>>, vector<2x8x128xf32>
    tpu.vector_store %arg10[%c0_55, %c0_56, %c0_57], %136 {strides = array<i32>} : memref<2x8x128xf32, #tpu.memory_space<vmem>>, vector<2x8x128xf32>,
    %c0_58 = arith.constant 0 : index
    %c0_59 = arith.constant 0 : index
    %c0_60 = arith.constant 0 : index
    %144 = vector.load %arg11[%c0_58, %c0_59, %c0_60] : memref<2x8x128xf32, #tpu.memory_space<vmem>>, vector<2x8x128xf32>
    tpu.vector_store %arg11[%c0_58, %c0_59, %c0_60], %142 {strides = array<i32>} : memref<2x8x128xf32, #tpu.memory_space<vmem>>, vector<2x8x128xf32>,
    %145 = arith.mulf %136, %136 : vector<2x8x128xf32>
    %146 = arith.mulf %142, %142 : vector<2x8x128xf32>
    %147 = arith.addf %145, %146 : vector<2x8x128xf32>
    %148 = math.sqrt %147 : vector<2x8x128xf32>
    %149 = vector.broadcast %5 : vector<1x8x1xf32> to vector<2x8x128xf32>
    %150 = arith.mulf %148, %149 : vector<2x8x128xf32>
    %cst_61 = arith.constant dense<0.000000e+00> : vector<2x128xf32>
    %151 = vector.multi_reduction <add>, %150, %cst_61 [1] : vector<2x8x128xf32> to vector<2x128xf32>
    %152 = vector.broadcast %6 : vector<1x128xf32> to vector<2x128xf32>
    %153 = arith.addf %151, %152 : vector<2x128xf32>
    %154 = math.tanh %153 : vector<2x128xf32>
    %155 = arith.mulf %110, %154 : vector<2x128xf32>
    %c0_62 = arith.constant 0 : index
    %c0_63 = arith.constant 0 : index
    %156 = vector.load %arg9[%c0_62, %c0_63] : memref<2x128xf32, #tpu.memory_space<vmem>>, vector<2x128xf32>
    tpu.vector_store %arg9[%c0_62, %c0_63], %155 {strides = array<i32>} : memref<2x128xf32, #tpu.memory_space<vmem>>, vector<2x128xf32>,
    %157 = arith.index_cast %c1_i32 : i32 to index
    %c0_64 = arith.constant 0 : index
    %c0_65 = arith.constant 0 : index
    %158 = vector.load %arg8[%157, %c0_64, %c0_65] : memref<4x2x128xf32, #tpu.memory_space<vmem>>, vector<1x2x128xf32>
    %159 = vector.shape_cast %158 : vector<1x2x128xf32> to vector<2x128xf32>
    %160 = vector.shape_cast %155 : vector<2x128xf32> to vector<1x2x128xf32>
    tpu.vector_store %arg8[%157, %c0_64, %c0_65], %160 {strides = array<i32>} : memref<4x2x128xf32, #tpu.memory_space<vmem>>, vector<1x2x128xf32>,
    %c2_i32 = arith.constant 2 : i32
    %c0_66 = arith.constant 0 : index
    %c0_67 = arith.constant 0 : index
    %161 = vector.load %arg9[%c0_66, %c0_67] : memref<2x128xf32, #tpu.memory_space<vmem>>, vector<2x128xf32>
    %162 = arith.index_cast %c2_i32 : i32 to index
    %c0_68 = arith.constant 0 : index
    %c0_69 = arith.constant 0 : index
    %163 = vector.load %arg2[%162, %c0_68, %c0_69] : memref<4x2x640xf32, #tpu.memory_space<vmem>>, vector<1x2x640xf32>
    %164 = vector.shape_cast %163 : vector<1x2x640xf32> to vector<2x640xf32>
    %cst_70 = arith.constant dense<0.000000e+00> : vector<2x640xf32>
    %165 = tpu.matmul %161, %3, %cst_70 {dimension_numbers = #tpu.dot_dimension_numbers<[1], [0], [0], [1], [0, 0, 1, 1], [], []>} : vector<2x128xf32>, vector<128x640xf32>, vector<2x640xf32> -> vector<2x640xf32>
    %166 = arith.addf %164, %165 : vector<2x640xf32>
    %167 = vector.extract_strided_slice %166 {offsets = [0, 0], sizes = [2, 128], strides = [1, 1]} : vector<2x640xf32> to vector<2x128xf32>
    %168 = arith.negf %167 : vector<2x128xf32>
    %169 = math.exp %168 : vector<2x128xf32>
    %cst_71 = arith.constant 1.000000e+00 : f32
    %170 = vector.broadcast %cst_71 : f32 to vector<2x128xf32>
    %171 = arith.addf %170, %169 : vector<2x128xf32>
    %172 = arith.divf %170, %171 : vector<2x128xf32>
    %173 = vector.extract_strided_slice %166 {offsets = [0, 128], sizes = [2, 128], strides = [1, 1]} : vector<2x640xf32> to vector<2x128xf32>
    %174 = arith.negf %173 : vector<2x128xf32>
    %175 = math.exp %174 : vector<2x128xf32>
    %cst_72 = arith.constant 1.000000e+00 : f32
    %176 = vector.broadcast %cst_72 : f32 to vector<2x128xf32>
    %177 = arith.addf %176, %175 : vector<2x128xf32>
    %178 = arith.divf %176, %177 : vector<2x128xf32>
    %179 = vector.extract_strided_slice %166 {offsets = [0, 256], sizes = [2, 128], strides = [1, 1]} : vector<2x640xf32> to vector<2x128xf32>
    %180 = math.tanh %179 : vector<2x128xf32>
    %181 = arith.mulf %172, %180 : vector<2x128xf32>
    %182 = vector.extract_strided_slice %166 {offsets = [0, 384], sizes = [2, 128], strides = [1, 1]} : vector<2x640xf32> to vector<2x128xf32>
    %183 = arith.negf %182 : vector<2x128xf32>
    %184 = math.exp %183 : vector<2x128xf32>
    %cst_73 = arith.constant 1.000000e+00 : f32
    %185 = vector.broadcast %cst_73 : f32 to vector<2x128xf32>
    %186 = arith.addf %185, %184 : vector<2x128xf32>
    %187 = arith.divf %185, %186 : vector<2x128xf32>
    %188 = vector.extract_strided_slice %166 {offsets = [0, 512], sizes = [2, 8], strides = [1, 1]} : vector<2x640xf32> to vector<2x8xf32>
    %189 = arith.negf %188 : vector<2x8xf32>
    %190 = math.exp %189 : vector<2x8xf32>
    %cst_74 = arith.constant 1.000000e+00 : f32
    %191 = vector.broadcast %cst_74 : f32 to vector<2x8xf32>
    %192 = arith.addf %191, %190 : vector<2x8xf32>
    %193 = arith.divf %191, %192 : vector<2x8xf32>
    %194 = vector.shape_cast %178 : vector<2x128xf32> to vector<2x1x128xf32>
    %195 = vector.shape_cast %193 : vector<2x8xf32> to vector<2x8x1xf32>
    %196 = vector.broadcast %194 : vector<2x1x128xf32> to vector<2x8x128xf32>
    %197 = vector.broadcast %195 : vector<2x8x1xf32> to vector<2x8x128xf32>
    %198 = arith.mulf %196, %197 : vector<2x8x128xf32>
    %199 = vector.shape_cast %181 : vector<2x128xf32> to vector<2x1x128xf32>
    %200 = arith.index_cast %c2_i32 : i32 to index
    %c0_75 = arith.constant 0 : index
    %c0_76 = arith.constant 0 : index
    %201 = vector.load %arg3[%200, %c0_75, %c0_76] : memref<4x8x1xf32, #tpu.memory_space<vmem>>, vector<1x8x1xf32>
    %202 = vector.shape_cast %201 : vector<1x8x1xf32> to vector<8x1xf32>
    %203 = vector.shape_cast %202 : vector<8x1xf32> to vector<1x8x1xf32>
    %204 = arith.index_cast %c2_i32 : i32 to index
    %c0_77 = arith.constant 0 : index
    %c0_78 = arith.constant 0 : index
    %205 = vector.load %arg4[%204, %c0_77, %c0_78] : memref<4x8x1xf32, #tpu.memory_space<vmem>>, vector<1x8x1xf32>
    %206 = vector.shape_cast %205 : vector<1x8x1xf32> to vector<8x1xf32>
    %207 = vector.shape_cast %206 : vector<8x1xf32> to vector<1x8x1xf32>
    %c0_79 = arith.constant 0 : index
    %c0_80 = arith.constant 0 : index
    %c0_81 = arith.constant 0 : index
    %208 = vector.load %arg10[%c0_79, %c0_80, %c0_81] : memref<2x8x128xf32, #tpu.memory_space<vmem>>, vector<2x8x128xf32>
    %209 = arith.mulf %198, %208 : vector<2x8x128xf32>
    %210 = vector.broadcast %199 : vector<2x1x128xf32> to vector<2x8x128xf32>
    %211 = vector.broadcast %203 : vector<1x8x1xf32> to vector<2x8x128xf32>
    %212 = arith.mulf %210, %211 : vector<2x8x128xf32>
    %213 = arith.addf %209, %212 : vector<2x8x128xf32>
    %c0_82 = arith.constant 0 : index
    %c0_83 = arith.constant 0 : index
    %c0_84 = arith.constant 0 : index
    %214 = vector.load %arg11[%c0_82, %c0_83, %c0_84] : memref<2x8x128xf32, #tpu.memory_space<vmem>>, vector<2x8x128xf32>
    %215 = arith.mulf %198, %214 : vector<2x8x128xf32>
    %216 = vector.broadcast %199 : vector<2x1x128xf32> to vector<2x8x128xf32>
    %217 = vector.broadcast %207 : vector<1x8x1xf32> to vector<2x8x128xf32>
    %218 = arith.mulf %216, %217 : vector<2x8x128xf32>
    %219 = arith.addf %215, %218 : vector<2x8x128xf32>
    %c0_85 = arith.constant 0 : index
    %c0_86 = arith.constant 0 : index
    %c0_87 = arith.constant 0 : index
    %220 = vector.load %arg10[%c0_85, %c0_86, %c0_87] : memref<2x8x128xf32, #tpu.memory_space<vmem>>, vector<2x8x128xf32>
    tpu.vector_store %arg10[%c0_85, %c0_86, %c0_87], %213 {strides = array<i32>} : memref<2x8x128xf32, #tpu.memory_space<vmem>>, vector<2x8x128xf32>,
    %c0_88 = arith.constant 0 : index
    %c0_89 = arith.constant 0 : index
    %c0_90 = arith.constant 0 : index
    %221 = vector.load %arg11[%c0_88, %c0_89, %c0_90] : memref<2x8x128xf32, #tpu.memory_space<vmem>>, vector<2x8x128xf32>
    tpu.vector_store %arg11[%c0_88, %c0_89, %c0_90], %219 {strides = array<i32>} : memref<2x8x128xf32, #tpu.memory_space<vmem>>, vector<2x8x128xf32>,
    %222 = arith.mulf %213, %213 : vector<2x8x128xf32>
    %223 = arith.mulf %219, %219 : vector<2x8x128xf32>
    %224 = arith.addf %222, %223 : vector<2x8x128xf32>
    %225 = math.sqrt %224 : vector<2x8x128xf32>
    %226 = vector.broadcast %5 : vector<1x8x1xf32> to vector<2x8x128xf32>
    %227 = arith.mulf %225, %226 : vector<2x8x128xf32>
    %cst_91 = arith.constant dense<0.000000e+00> : vector<2x128xf32>
    %228 = vector.multi_reduction <add>, %227, %cst_91 [1] : vector<2x8x128xf32> to vector<2x128xf32>
    %229 = vector.broadcast %6 : vector<1x128xf32> to vector<2x128xf32>
    %230 = arith.addf %228, %229 : vector<2x128xf32>
    %231 = math.tanh %230 : vector<2x128xf32>
    %232 = arith.mulf %187, %231 : vector<2x128xf32>
    %c0_92 = arith.constant 0 : index
    %c0_93 = arith.constant 0 : index
    %233 = vector.load %arg9[%c0_92, %c0_93] : memref<2x128xf32, #tpu.memory_space<vmem>>, vector<2x128xf32>
    tpu.vector_store %arg9[%c0_92, %c0_93], %232 {strides = array<i32>} : memref<2x128xf32, #tpu.memory_space<vmem>>, vector<2x128xf32>,
    %234 = arith.index_cast %c2_i32 : i32 to index
    %c0_94 = arith.constant 0 : index
    %c0_95 = arith.constant 0 : index
    %235 = vector.load %arg8[%234, %c0_94, %c0_95] : memref<4x2x128xf32, #tpu.memory_space<vmem>>, vector<1x2x128xf32>
    %236 = vector.shape_cast %235 : vector<1x2x128xf32> to vector<2x128xf32>
    %237 = vector.shape_cast %232 : vector<2x128xf32> to vector<1x2x128xf32>
    tpu.vector_store %arg8[%234, %c0_94, %c0_95], %237 {strides = array<i32>} : memref<4x2x128xf32, #tpu.memory_space<vmem>>, vector<1x2x128xf32>,
    %c3_i32 = arith.constant 3 : i32
    %c0_96 = arith.constant 0 : index
    %c0_97 = arith.constant 0 : index
    %238 = vector.load %arg9[%c0_96, %c0_97] : memref<2x128xf32, #tpu.memory_space<vmem>>, vector<2x128xf32>
    %239 = arith.index_cast %c3_i32 : i32 to index
    %c0_98 = arith.constant 0 : index
    %c0_99 = arith.constant 0 : index
    %240 = vector.load %arg2[%239, %c0_98, %c0_99] : memref<4x2x640xf32, #tpu.memory_space<vmem>>, vector<1x2x640xf32>
    %241 = vector.shape_cast %240 : vector<1x2x640xf32> to vector<2x640xf32>
    %cst_100 = arith.constant dense<0.000000e+00> : vector<2x640xf32>
    %242 = tpu.matmul %238, %3, %cst_100 {dimension_numbers = #tpu.dot_dimension_numbers<[1], [0], [0], [1], [0, 0, 1, 1], [], []>} : vector<2x128xf32>, vector<128x640xf32>, vector<2x640xf32> -> vector<2x640xf32>
    %243 = arith.addf %241, %242 : vector<2x640xf32>
    %244 = vector.extract_strided_slice %243 {offsets = [0, 0], sizes = [2, 128], strides = [1, 1]} : vector<2x640xf32> to vector<2x128xf32>
    %245 = arith.negf %244 : vector<2x128xf32>
    %246 = math.exp %245 : vector<2x128xf32>
    %cst_101 = arith.constant 1.000000e+00 : f32
    %247 = vector.broadcast %cst_101 : f32 to vector<2x128xf32>
    %248 = arith.addf %247, %246 : vector<2x128xf32>
    %249 = arith.divf %247, %248 : vector<2x128xf32>
    %250 = vector.extract_strided_slice %243 {offsets = [0, 128], sizes = [2, 128], strides = [1, 1]} : vector<2x640xf32> to vector<2x128xf32>
    %251 = arith.negf %250 : vector<2x128xf32>
    %252 = math.exp %251 : vector<2x128xf32>
    %cst_102 = arith.constant 1.000000e+00 : f32
    %253 = vector.broadcast %cst_102 : f32 to vector<2x128xf32>
    %254 = arith.addf %253, %252 : vector<2x128xf32>
    %255 = arith.divf %253, %254 : vector<2x128xf32>
    %256 = vector.extract_strided_slice %243 {offsets = [0, 256], sizes = [2, 128], strides = [1, 1]} : vector<2x640xf32> to vector<2x128xf32>
    %257 = math.tanh %256 : vector<2x128xf32>
    %258 = arith.mulf %249, %257 : vector<2x128xf32>
    %259 = vector.extract_strided_slice %243 {offsets = [0, 384], sizes = [2, 128], strides = [1, 1]} : vector<2x640xf32> to vector<2x128xf32>
    %260 = arith.negf %259 : vector<2x128xf32>
    %261 = math.exp %260 : vector<2x128xf32>
    %cst_103 = arith.constant 1.000000e+00 : f32
    %262 = vector.broadcast %cst_103 : f32 to vector<2x128xf32>
    %263 = arith.addf %262, %261 : vector<2x128xf32>
    %264 = arith.divf %262, %263 : vector<2x128xf32>
    %265 = vector.extract_strided_slice %243 {offsets = [0, 512], sizes = [2, 8], strides = [1, 1]} : vector<2x640xf32> to vector<2x8xf32>
    %266 = arith.negf %265 : vector<2x8xf32>
    %267 = math.exp %266 : vector<2x8xf32>
    %cst_104 = arith.constant 1.000000e+00 : f32
    %268 = vector.broadcast %cst_104 : f32 to vector<2x8xf32>
    %269 = arith.addf %268, %267 : vector<2x8xf32>
    %270 = arith.divf %268, %269 : vector<2x8xf32>
    %271 = vector.shape_cast %255 : vector<2x128xf32> to vector<2x1x128xf32>
    %272 = vector.shape_cast %270 : vector<2x8xf32> to vector<2x8x1xf32>
    %273 = vector.broadcast %271 : vector<2x1x128xf32> to vector<2x8x128xf32>
    %274 = vector.broadcast %272 : vector<2x8x1xf32> to vector<2x8x128xf32>
    %275 = arith.mulf %273, %274 : vector<2x8x128xf32>
    %276 = vector.shape_cast %258 : vector<2x128xf32> to vector<2x1x128xf32>
    %277 = arith.index_cast %c3_i32 : i32 to index
    %c0_105 = arith.constant 0 : index
    %c0_106 = arith.constant 0 : index
    %278 = vector.load %arg3[%277, %c0_105, %c0_106] : memref<4x8x1xf32, #tpu.memory_space<vmem>>, vector<1x8x1xf32>
    %279 = vector.shape_cast %278 : vector<1x8x1xf32> to vector<8x1xf32>
    %280 = vector.shape_cast %279 : vector<8x1xf32> to vector<1x8x1xf32>
    %281 = arith.index_cast %c3_i32 : i32 to index
    %c0_107 = arith.constant 0 : index
    %c0_108 = arith.constant 0 : index
    %282 = vector.load %arg4[%281, %c0_107, %c0_108] : memref<4x8x1xf32, #tpu.memory_space<vmem>>, vector<1x8x1xf32>
    %283 = vector.shape_cast %282 : vector<1x8x1xf32> to vector<8x1xf32>
    %284 = vector.shape_cast %283 : vector<8x1xf32> to vector<1x8x1xf32>
    %c0_109 = arith.constant 0 : index
    %c0_110 = arith.constant 0 : index
    %c0_111 = arith.constant 0 : index
    %285 = vector.load %arg10[%c0_109, %c0_110, %c0_111] : memref<2x8x128xf32, #tpu.memory_space<vmem>>, vector<2x8x128xf32>
    %286 = arith.mulf %275, %285 : vector<2x8x128xf32>
    %287 = vector.broadcast %276 : vector<2x1x128xf32> to vector<2x8x128xf32>
    %288 = vector.broadcast %280 : vector<1x8x1xf32> to vector<2x8x128xf32>
    %289 = arith.mulf %287, %288 : vector<2x8x128xf32>
    %290 = arith.addf %286, %289 : vector<2x8x128xf32>
    %c0_112 = arith.constant 0 : index
    %c0_113 = arith.constant 0 : index
    %c0_114 = arith.constant 0 : index
    %291 = vector.load %arg11[%c0_112, %c0_113, %c0_114] : memref<2x8x128xf32, #tpu.memory_space<vmem>>, vector<2x8x128xf32>
    %292 = arith.mulf %275, %291 : vector<2x8x128xf32>
    %293 = vector.broadcast %276 : vector<2x1x128xf32> to vector<2x8x128xf32>
    %294 = vector.broadcast %284 : vector<1x8x1xf32> to vector<2x8x128xf32>
    %295 = arith.mulf %293, %294 : vector<2x8x128xf32>
    %296 = arith.addf %292, %295 : vector<2x8x128xf32>
    %c0_115 = arith.constant 0 : index
    %c0_116 = arith.constant 0 : index
    %c0_117 = arith.constant 0 : index
    %297 = vector.load %arg10[%c0_115, %c0_116, %c0_117] : memref<2x8x128xf32, #tpu.memory_space<vmem>>, vector<2x8x128xf32>
    tpu.vector_store %arg10[%c0_115, %c0_116, %c0_117], %290 {strides = array<i32>} : memref<2x8x128xf32, #tpu.memory_space<vmem>>, vector<2x8x128xf32>,
    %c0_118 = arith.constant 0 : index
    %c0_119 = arith.constant 0 : index
    %c0_120 = arith.constant 0 : index
    %298 = vector.load %arg11[%c0_118, %c0_119, %c0_120] : memref<2x8x128xf32, #tpu.memory_space<vmem>>, vector<2x8x128xf32>
    tpu.vector_store %arg11[%c0_118, %c0_119, %c0_120], %296 {strides = array<i32>} : memref<2x8x128xf32, #tpu.memory_space<vmem>>, vector<2x8x128xf32>,
    %299 = arith.mulf %290, %290 : vector<2x8x128xf32>
    %300 = arith.mulf %296, %296 : vector<2x8x128xf32>
    %301 = arith.addf %299, %300 : vector<2x8x128xf32>
    %302 = math.sqrt %301 : vector<2x8x128xf32>
    %303 = vector.broadcast %5 : vector<1x8x1xf32> to vector<2x8x128xf32>
    %304 = arith.mulf %302, %303 : vector<2x8x128xf32>
    %cst_121 = arith.constant dense<0.000000e+00> : vector<2x128xf32>
    %305 = vector.multi_reduction <add>, %304, %cst_121 [1] : vector<2x8x128xf32> to vector<2x128xf32>
    %306 = vector.broadcast %6 : vector<1x128xf32> to vector<2x128xf32>
    %307 = arith.addf %305, %306 : vector<2x128xf32>
    %308 = math.tanh %307 : vector<2x128xf32>
    %309 = arith.mulf %264, %308 : vector<2x128xf32>
    %c0_122 = arith.constant 0 : index
    %c0_123 = arith.constant 0 : index
    %310 = vector.load %arg9[%c0_122, %c0_123] : memref<2x128xf32, #tpu.memory_space<vmem>>, vector<2x128xf32>
    tpu.vector_store %arg9[%c0_122, %c0_123], %309 {strides = array<i32>} : memref<2x128xf32, #tpu.memory_space<vmem>>, vector<2x128xf32>,
    %311 = arith.index_cast %c3_i32 : i32 to index
    %c0_124 = arith.constant 0 : index
    %c0_125 = arith.constant 0 : index
    %312 = vector.load %arg8[%311, %c0_124, %c0_125] : memref<4x2x128xf32, #tpu.memory_space<vmem>>, vector<1x2x128xf32>
    %313 = vector.shape_cast %312 : vector<1x2x128xf32> to vector<2x128xf32>
    %314 = vector.shape_cast %309 : vector<2x128xf32> to vector<1x2x128xf32>
    tpu.vector_store %arg8[%311, %c0_124, %c0_125], %314 {strides = array<i32>} : memref<4x2x128xf32, #tpu.memory_space<vmem>>, vector<1x2x128xf32>,
    %c4_i32 = arith.constant 4 : i32
    return
  }
  func.func @transform_0(%arg0: i32, %arg1: i32) -> (i32, i32, i32) {
    %c0_i32 = arith.constant 0 : i32
    %c0_i32_0 = arith.constant 0 : i32
    return %arg1, %arg0, %c0_i32 : i32, i32, i32
  }
  func.func @transform_1(%arg0: i32, %arg1: i32) -> (i32, i32, i32) {
    %c0_i32 = arith.constant 0 : i32
    %c0_i32_0 = arith.constant 0 : i32
    %c0_i32_1 = arith.constant 0 : i32
    return %arg1, %c0_i32, %c0_i32_0 : i32, i32, i32
  }
  func.func @transform_2(%arg0: i32, %arg1: i32) -> (i32, i32, i32) {
    %c0_i32 = arith.constant 0 : i32
    %c0_i32_0 = arith.constant 0 : i32
    %c0_i32_1 = arith.constant 0 : i32
    return %arg1, %c0_i32, %c0_i32_0 : i32, i32, i32
  }
  func.func @transform_3(%arg0: i32, %arg1: i32) -> (i32, i32) {
    %c0_i32 = arith.constant 0 : i32
    %c0_i32_0 = arith.constant 0 : i32
    %c0_i32_1 = arith.constant 0 : i32
    return %c0_i32, %c0_i32_0 : i32, i32
  }
  func.func @transform_4(%arg0: i32, %arg1: i32) -> (i32, i32) {
    %c0_i32 = arith.constant 0 : i32
    %c0_i32_0 = arith.constant 0 : i32
    %c0_i32_1 = arith.constant 0 : i32
    return %c0_i32, %c0_i32_0 : i32, i32
  }
  func.func @transform_5(%arg0: i32, %arg1: i32) -> (i32, i32) {
    %c0_i32 = arith.constant 0 : i32
    %c0_i32_0 = arith.constant 0 : i32
    %c0_i32_1 = arith.constant 0 : i32
    return %c0_i32, %c0_i32_0 : i32, i32
  }
  func.func @transform_6(%arg0: i32, %arg1: i32) -> (i32, i32, i32) {
    %c0_i32 = arith.constant 0 : i32
    %c0_i32_0 = arith.constant 0 : i32
    return %arg1, %arg0, %c0_i32 : i32, i32, i32
  }
}

</mosaic_0001>

<llo_original>
// kernel: sfm_forward.1
$region0: #{sfm_forward.1}
  #allocation0 [shape = 'u32[]', space=smem, size = 0x4, offset = 0x4, fixed_abs, tag = 'smem constant byte address 0x4 - core index']
  #allocation1 [shape = 'u32[144,128]{1,0:T(1,128)}', space=vmem, size = 0x12000, scoped, tag = 'internal scratch']
  #allocation2 [shape = 'f32[2,128]{1,0:T(2,128)}', space=vmem, size = 0x400, scoped, tag = 'scratch operand']
  #allocation3 [shape = 'f32[2,8,128]{2,1,0:T(8,128)}', space=vmem, size = 0x2000, scoped, tag = 'scratch operand']
  #allocation4 [shape = 'f32[2,8,128]{2,1,0:T(8,128)}', space=vmem, size = 0x2000, scoped, tag = 'scratch operand']
  %s0 = inlined_call_operand.vmem [shape: f32[8,2,640], index: 0, kind: input, shape index: {}]
  %s1 = inlined_call_operand.vmem [shape: f32[8,8,1], index: 1, kind: input, shape index: {}]
  %s2 = inlined_call_operand.vmem [shape: f32[8,8,1], index: 2, kind: input, shape index: {}]
  %s3 = inlined_call_operand.vmem [shape: f32[128,640], index: 3, kind: input, shape index: {}]
  %s4 = inlined_call_operand.vmem [shape: f32[8,1], index: 4, kind: input, shape index: {}]
  %s5 = inlined_call_operand.vmem [shape: f32[1,128], index: 5, kind: input, shape index: {}]
  %s6 = inlined_call_operand.vmem [shape: f32[8,2,128], index: 6, kind: output, shape index: {}]
  %s7 = sld [smem:[#allocation0]]
  $region61: #{sfm_forward.1} parent=0
    _
  %s9 = ssub.s32 1, %s7
  %s10 = scalar_select 0, %s9, %s7
  loop: start=0, step=1, limit=4
  $region2: #{sfm_forward.1} parent=0 // loop_pre_header
    _
  $region3: #{sfm_forward.1} parent=0 // loop_header
    %s12 = sphi 0, %s16
    %p13 = scmp.ge.s32.totalorder %s12, 4
    %s19 = sphi 0, %s31
    %s20 = sphi 0, %s27
    %s21 = sphi 0, %s19
    %s22 = sphi 0, %s20
    %s23 = sphi 0, %s21
    %s24 = sphi 0, %s22
    %s36 = sphi 0, %s38
    %s39 = sphi 0, %s36
    %s40 = sphi 0, %s39
    %s56 = sphi 0, %s40
    %s62 = sphi 0, %s64
    %s65 = sphi 0, %s62
    %s66 = sphi 0, %s65
    %s82 = sphi 0, %s66
    %s88 = sphi 0, %s90
    %s91 = sphi 0, %s88
    %s92 = sphi 0, %s91
    %s108 = sphi 0, %s92
    %s112 = sphi 0, %s112
    %s114 = sphi 0, %s112
    %s115 = sphi 0, %s114
    %s129 = sphi 0, %s115
    %s133 = sphi 0, %s133
    %s135 = sphi 0, %s133
    %s136 = sphi 0, %s135
    %s150 = sphi 0, %s136
    %s154 = sphi 0, %s154
    %s156 = sphi 0, %s154
    %s157 = sphi 0, %s156
    %s171 = sphi 0, %s157
    %s179 = sphi 0, %s181
    %s182 = sphi 0, %s179
    %s183 = sphi 0, %s182
    %s199 = sphi 0, %s183
  $region4: #{sfm_forward.1} parent=0 // loop_header_branch
    %15 = sbr.rel (%p13) target = $region8
  $region5: #{sfm_forward.1} parent=0 // loop_body
    %s17 = ssub.s32 %s12, 1
    %s18 = ssub.s32 %s12, 2
    %s25 = sadd.s32 1, %s20
    %p26 = scmp.ge.s32.totalorder %s25, 2
    %s27 = scalar_select %p26, 0, %s25
    %s28 = sadd.s32 1, %s19
    %s29 = scalar_select %p26, %s28, %s19
    %p30 = scmp.ge.s32.totalorder %s29, 1
    %s31 = scalar_select %p30, 0, %s29
    %s32 = ssub.s32 %s20, %s27
    %s33 = ssub.s32 %s19, %s31
    %s34 = sor.u32 %s32, %s33
    %p35 = scmp.eq.s32.totalorder %s34, 0
    %s37 = sadd.s32 %s36, 1
    %s38 = scalar_select %p35, %s36, %s37
    %p41 = pneg %p35
    %p42 = scmp.eq.s32.totalorder %s12, 1
    %p43 = por %p41, %p42
    %p44 = scmp.ne.s32.totalorder %s36, %s39
    %p45 = scmp.eq.s32.totalorder %s12, 0
    %p46 = por %p44, %p45
    %p47 = scmp.ne.s32.totalorder %s36, %s39
    %p48 = scmp.eq.s32.totalorder %s17, 1
    %p49 = por %p47, %p48
    %p50 = scmp.ne.s32.totalorder %s39, %s40
    %p51 = scmp.eq.s32.totalorder %s17, 0
    %p52 = por %p50, %p51
    %p53 = scmp.ne.s32.totalorder %s39, %s40
    %p54 = scmp.eq.s32.totalorder %s18, 1
    %p55 = por %p53, %p54
    %p57 = scmp.ne.s32.totalorder %s40, %s56
    %p58 = scmp.eq.s32.totalorder %s18, 0
    %p59 = por %p57, %p58
    %s60 = ssub.s32 %s20, %s27
    %p61 = scmp.eq.s32.totalorder %s60, 0
    %s63 = sadd.s32 %s62, 1
    %s64 = scalar_select %p61, %s62, %s63
    %p67 = pneg %p61
    %p68 = scmp.eq.s32.totalorder %s12, 1
    %p69 = por %p67, %p68
    %p70 = scmp.ne.s32.totalorder %s62, %s65
    %p71 = scmp.eq.s32.totalorder %s12, 0
    %p72 = por %p70, %p71
    %p73 = scmp.ne.s32.totalorder %s62, %s65
    %p74 = scmp.eq.s32.totalorder %s17, 1
    %p75 = por %p73, %p74
    %p76 = scmp.ne.s32.totalorder %s65, %s66
    %p77 = scmp.eq.s32.totalorder %s17, 0
    %p78 = por %p76, %p77
    %p79 = scmp.ne.s32.totalorder %s65, %s66
    %p80 = scmp.eq.s32.totalorder %s18, 1
    %p81 = por %p79, %p80
    %p83 = scmp.ne.s32.totalorder %s66, %s82
    %p84 = scmp.eq.s32.totalorder %s18, 0
    %p85 = por %p83, %p84
    %s86 = ssub.s32 %s20, %s27
    %p87 = scmp.eq.s32.totalorder %s86, 0
    %s89 = sadd.s32 %s88, 1
    %s90 = scalar_select %p87, %s88, %s89
    %p93 = pneg %p87
    %p94 = scmp.eq.s32.totalorder %s12, 1
    %p95 = por %p93, %p94
    %p96 = scmp.ne.s32.totalorder %s88, %s91
    %p97 = scmp.eq.s32.totalorder %s12, 0
    %p98 = por %p96, %p97
    %p99 = scmp.ne.s32.totalorder %s88, %s91
    %p100 = scmp.eq.s32.totalorder %s17, 1
    %p101 = por %p99, %p100
    %p102 = scmp.ne.s32.totalorder %s91, %s92
    %p103 = scmp.eq.s32.totalorder %s17, 0
    %p104 = por %p102, %p103
    %p105 = scmp.ne.s32.totalorder %s91, %s92
    %p106 = scmp.eq.s32.totalorder %s18, 1
    %p107 = por %p105, %p106
    %p109 = scmp.ne.s32.totalorder %s92, %s108
    %p110 = scmp.eq.s32.totalorder %s18, 0
    %p111 = por %p109, %p110
    %s113 = sadd.s32 %s112, 1
    %p116 = scmp.eq.s32.totalorder %s12, 1
    %p117 = scmp.ne.s32.totalorder %s112, %s114
    %p118 = scmp.eq.s32.totalorder %s12, 0
    %p119 = por %p117, %p118
    %p120 = scmp.ne.s32.totalorder %s112, %s114
    %p121 = scmp.eq.s32.totalorder %s17, 1
    %p122 = por %p120, %p121
    %p123 = scmp.ne.s32.totalorder %s114, %s115
    %p124 = scmp.eq.s32.totalorder %s17, 0
    %p125 = por %p123, %p124
    %p126 = scmp.ne.s32.totalorder %s114, %s115
    %p127 = scmp.eq.s32.totalorder %s18, 1
    %p128 = por %p126, %p127
    %p130 = scmp.ne.s32.totalorder %s115, %s129
    %p131 = scmp.eq.s32.totalorder %s18, 0
    %p132 = por %p130, %p131
    %s134 = sadd.s32 %s133, 1
    %p137 = scmp.eq.s32.totalorder %s12, 1
    %p138 = scmp.ne.s32.totalorder %s133, %s135
    %p139 = scmp.eq.s32.totalorder %s12, 0
    %p140 = por %p138, %p139
    %p141 = scmp.ne.s32.totalorder %s133, %s135
    %p142 = scmp.eq.s32.totalorder %s17, 1
    %p143 = por %p141, %p142
    %p144 = scmp.ne.s32.totalorder %s135, %s136
    %p145 = scmp.eq.s32.totalorder %s17, 0
    %p146 = por %p144, %p145
    %p147 = scmp.ne.s32.totalorder %s135, %s136
    %p148 = scmp.eq.s32.totalorder %s18, 1
    %p149 = por %p147, %p148
    %p151 = scmp.ne.s32.totalorder %s136, %s150
    %p152 = scmp.eq.s32.totalorder %s18, 0
    %p153 = por %p151, %p152
    %s155 = sadd.s32 %s154, 1
    %p158 = scmp.eq.s32.totalorder %s12, 1
    %p159 = scmp.ne.s32.totalorder %s154, %s156
    %p160 = scmp.eq.s32.totalorder %s12, 0
    %p161 = por %p159, %p160
    %p162 = scmp.ne.s32.totalorder %s154, %s156
    %p163 = scmp.eq.s32.totalorder %s17, 1
    %p164 = por %p162, %p163
    %p165 = scmp.ne.s32.totalorder %s156, %s157
    %p166 = scmp.eq.s32.totalorder %s17, 0
    %p167 = por %p165, %p166
    %p168 = scmp.ne.s32.totalorder %s156, %s157
    %p169 = scmp.eq.s32.totalorder %s18, 1
    %p170 = por %p168, %p169
    %p172 = scmp.ne.s32.totalorder %s157, %s171
    %p173 = scmp.eq.s32.totalorder %s18, 0
    %p174 = por %p172, %p173
    %s175 = ssub.s32 %s20, %s27
    %s176 = ssub.s32 %s19, %s31
    %s177 = sor.u32 %s175, %s176
    %p178 = scmp.eq.s32.totalorder %s177, 0
    %s180 = sadd.s32 %s179, 1
    %s181 = scalar_select %p178, %s179, %s180
    %p184 = pneg %p178
    %p185 = scmp.eq.s32.totalorder %s12, 1
    %p186 = por %p184, %p185
    %p187 = scmp.ne.s32.totalorder %s179, %s182
    %p188 = scmp.eq.s32.totalorder %s12, 0
    %p189 = por %p187, %p188
    %p190 = scmp.ne.s32.totalorder %s179, %s182
    %p191 = scmp.eq.s32.totalorder %s17, 1
    %p192 = por %p190, %p191
    %p193 = scmp.ne.s32.totalorder %s182, %s183
    %p194 = scmp.eq.s32.totalorder %s17, 0
    %p195 = por %p193, %p194
    %p196 = scmp.ne.s32.totalorder %s182, %s183
    %p197 = scmp.eq.s32.totalorder %s18, 1
    %p198 = por %p196, %p197
    %p200 = scmp.ne.s32.totalorder %s183, %s199
    %p201 = scmp.eq.s32.totalorder %s18, 0
    %p202 = por %p200, %p201
    %p203 = scmp.le.s32.totalorder 1, %s12
    %p204 = scmp.lt.s32.totalorder %s12, 3
    %p205 = pnand %p203, %p204
    %p206 = pneg %p205
    // Predicated region
    $region9: #{sfm_forward.1} parent=5 // pred_check
      _
    $region10: #{sfm_forward.1} parent=5 // pred_check_branch
      %208 = sbr.rel (%p205) target = $region12
    $region11: #{sfm_forward.1} parent=5 // pred_region
      %s209 = ssub.s32 %s12, 1
      // Predicated region
      $region13: #{sfm_forward.1} parent=11 // pred_check
        %p210 = pneg %p125
      $region14: #{sfm_forward.1} parent=11 // pred_check_branch
        %212 = sbr.rel (%p210) target = $region16
      $region15: #{sfm_forward.1} parent=11 // pred_region
        _
      $region16: #{sfm_forward.1} parent=11 // pred_fallthru
        _
      // Predicated region
      $region17: #{sfm_forward.1} parent=11 // pred_check
        %p213 = pneg %p146
      $region18: #{sfm_forward.1} parent=11 // pred_check_branch
        %215 = sbr.rel (%p213) target = $region20
      $region19: #{sfm_forward.1} parent=11 // pred_region
        _
      $region20: #{sfm_forward.1} parent=11 // pred_fallthru
        _
      // Predicated region
      $region21: #{sfm_forward.1} parent=11 // pred_check
        %p216 = pneg %p167
      $region22: #{sfm_forward.1} parent=11 // pred_check_branch
        %218 = sbr.rel (%p216) target = $region24
      $region23: #{sfm_forward.1} parent=11 // pred_region
        _
      $region24: #{sfm_forward.1} parent=11 // pred_fallthru
        _
    $region12: #{sfm_forward.1} parent=5 // pred_fallthru
      _
    %p219 = scmp.lt.s32.totalorder %s12, 2
    // Predicated region
    $region25: #{sfm_forward.1} parent=5 // pred_check
      %p220 = pneg %p219
    $region26: #{sfm_forward.1} parent=5 // pred_check_branch
      %222 = sbr.rel (%p220) target = $region28
    $region27: #{sfm_forward.1} parent=5 // pred_region
      // Predicated region
      $region29: #{sfm_forward.1} parent=27 // pred_check
        %p223 = pneg %p46
      $region30: #{sfm_forward.1} parent=27 // pred_check_branch
        %225 = sbr.rel (%p223) target = $region32
      $region31: #{sfm_forward.1} parent=27 // pred_region
        %s226 = smul.u32 4, %s20
        %p227 = scmp.lt.s32.totalorder %s226, 7
        %s228 = scalar_select %p227, %s226, 7
        %p229 = scmp.lt.s32.totalorder %s19, 0
        %s230 = scalar_select %p229, %s19, 0
        %s231 = smul.addr %s230, 5
        %s232 = smul.addr %s228, 5
        %s233 = sadd.s32 %s231, %s232
        %s234 = smul.addr %s233, 2
        %s235 = scalar_lea.vmem %s0, %s234
        %s236 = smul.u32 4, %s20
      $region32: #{sfm_forward.1} parent=27 // pred_fallthru
        _
      // Predicated region
      $region33: #{sfm_forward.1} parent=27 // pred_check
        %p237 = pneg %p72
      $region34: #{sfm_forward.1} parent=27 // pred_check_branch
        %239 = sbr.rel (%p237) target = $region36
      $region35: #{sfm_forward.1} parent=27 // pred_region
        %s240 = smul.u32 4, %s20
        %p241 = scmp.lt.s32.totalorder %s240, 7
        %s242 = scalar_select %p241, %s240, 7
        %s243 = smul.addr %s242, 8
        %s244 = scalar_lea.vmem %s1, %s243
        %s245 = smul.u32 4, %s20
      $region36: #{sfm_forward.1} parent=27 // pred_fallthru
        _
      // Predicated region
      $region37: #{sfm_forward.1} parent=27 // pred_check
        %p246 = pneg %p98
      $region38: #{sfm_forward.1} parent=27 // pred_check_branch
        %248 = sbr.rel (%p246) target = $region40
      $region39: #{sfm_forward.1} parent=27 // pred_region
        %s249 = smul.u32 4, %s20
        %p250 = scmp.lt.s32.totalorder %s249, 7
        %s251 = scalar_select %p250, %s249, 7
        %s252 = smul.addr %s251, 8
        %s253 = scalar_lea.vmem %s2, %s252
        %s254 = smul.u32 4, %s20
      $region40: #{sfm_forward.1} parent=27 // pred_fallthru
        _
    $region28: #{sfm_forward.1} parent=5 // pred_fallthru
      _
    %p255 = scmp.le.s32.totalorder 1, %s12
    %p256 = scmp.lt.s32.totalorder %s12, 3
    %p257 = pnand %p255, %p256
    %p258 = pneg %p257
    // Predicated region
    $region41: #{sfm_forward.1} parent=5 // pred_check
      _
    $region42: #{sfm_forward.1} parent=5 // pred_check_branch
      %260 = sbr.rel (%p257) target = $region44
    $region43: #{sfm_forward.1} parent=5 // pred_region
      %s261 = ssub.s32 %s12, 1
      %s262 = smul.u32 4, %s22
      %p263 = scmp.lt.s32.totalorder %s262, 7
      %s264 = scalar_select %p263, %s262, 7
      %p265 = scmp.lt.s32.totalorder %s21, 0
      %s266 = scalar_select %p265, %s21, 0
      %s267 = smul.addr %s266, 5
      %s268 = smul.addr %s264, 5
      %s269 = sadd.s32 %s267, %s268
      %s270 = smul.addr %s269, 2
      %s271 = scalar_lea.vmem %s0, %s270
      %p272 = pneg %p52
      %p273 = pneg %p49
      %s274 = smul.u32 4, %s22
      %p275 = scmp.lt.s32.totalorder %s274, 7
      %s276 = scalar_select %p275, %s274, 7
      %s277 = smul.addr %s276, 8
      %s278 = scalar_lea.vmem %s1, %s277
      %p279 = pneg %p78
      %p280 = pneg %p75
      %s281 = smul.u32 4, %s22
      %p282 = scmp.lt.s32.totalorder %s281, 7
      %s283 = scalar_select %p282, %s281, 7
      %s284 = smul.addr %s283, 8
      %s285 = scalar_lea.vmem %s2, %s284
      %p286 = pneg %p104
      %p287 = pneg %p101
      %p288 = pneg %p125
      %p289 = pneg %p122
      %p290 = pneg %p146
      %p291 = pneg %p143
      %p292 = pneg %p167
      %p293 = pneg %p164
      %p294 = pneg %p195
      %p295 = pneg %p192
      %s296 = smul.u32 4, %s22
      %p297 = scmp.lt.s32.totalorder %s296, 7
      %s298 = scalar_select %p297, %s296, 7
      %p299 = scmp.lt.s32.totalorder %s21, 0
      %s300 = scalar_select %p299, %s21, 0
      %s301 = sadd.s32 %s300, %s298
      %s302 = smul.addr %s301, 2
      %s303 = scalar_lea.vmem %s6, %s302
      %s304 = smul.u32 4, %s22
      %p305 = scmp.lt.s32.totalorder %s304, 7
      %s306 = scalar_select %p305, %s304, 7
      %p307 = scmp.lt.s32.totalorder %s21, 0
      %s308 = scalar_select %p307, %s21, 0
      %s309 = smul.addr %s308, 5
      %s310 = smul.addr %s306, 5
      %s311 = sadd.s32 %s309, %s310
      %s312 = smul.addr %s311, 2
      %s313 = scalar_lea.vmem %s0, %s312
      %s314 = smul.u32 4, %s22
      %s315 = smul.u32 4, %s22
      %p316 = scmp.lt.s32.totalorder %s315, 7
      %s317 = scalar_select %p316, %s315, 7
      %s318 = smul.addr %s317, 8
      %s319 = scalar_lea.vmem %s1, %s318
      %s320 = smul.u32 4, %s22
      %s321 = smul.u32 4, %s22
      %p322 = scmp.lt.s32.totalorder %s321, 7
      %s323 = scalar_select %p322, %s321, 7
      %s324 = smul.addr %s323, 8
      %s325 = scalar_lea.vmem %s2, %s324
      %s326 = smul.u32 4, %s22
      %s327 = smul.u32 4, %s22
      %p328 = scmp.lt.s32.totalorder %s327, 7
      %s329 = scalar_select %p328, %s327, 7
      %p330 = scmp.lt.s32.totalorder %s21, 0
      %s331 = scalar_select %p330, %s21, 0
      %s332 = sadd.s32 %s331, %s329
      %s333 = smul.addr %s332, 2
      %s334 = scalar_lea.vmem %s6, %s333
      %s335 = smul.u32 4, %s22
      %p336 = scmp.eq.s32.totalorder %s22, 0
      // Predicated region
      $region45: #{sfm_forward.1} parent=43 // pred_check
        %p337 = pneg %p336
      $region46: #{sfm_forward.1} parent=43 // pred_check_branch
        %339 = sbr.rel (%p337) target = $region48
      $region47: #{sfm_forward.1} parent=43 // pred_region
        %340 = vst [vmem:[#allocation2] sm:$0x3] 0.0
        %341 = vst [vmem:[#allocation3] sm:$0xff] 0.0
        %342 = vst [vmem:[#allocation3 + $0x8] sm:$0xff] 0.0
        %343 = vst [vmem:[#allocation4] sm:$0xff] 0.0
        %344 = vst [vmem:[#allocation4 + $0x8] sm:$0xff] 0.0
      $region48: #{sfm_forward.1} parent=43 // pred_fallthru
        _
      %v345 = vld [vmem:[%s3] sm:$0xff]
      %v346 = vld [vmem:[%s3 + $0x8] sm:$0xff]
      %v347 = vld [vmem:[%s3 + $0x10] sm:$0xff]
      %v348 = vld [vmem:[%s3 + $0x18] sm:$0xff]
      %v349 = vld [vmem:[%s3 + $0x20] sm:$0xff]
      %v350 = vld [vmem:[%s3 + $0x28] sm:$0xff]
      %v351 = vld [vmem:[%s3 + $0x30] sm:$0xff]
      %v352 = vld [vmem:[%s3 + $0x38] sm:$0xff]
      %v353 = vld [vmem:[%s3 + $0x40] sm:$0xff]
      %v354 = vld [vmem:[%s3 + $0x48] sm:$0xff]
      %v355 = vld [vmem:[%s3 + $0x50] sm:$0xff]
      %v356 = vld [vmem:[%s3 + $0x58] sm:$0xff]
      %v357 = vld [vmem:[%s3 + $0x60] sm:$0xff]
      %v358 = vld [vmem:[%s3 + $0x68] sm:$0xff]
      %v359 = vld [vmem:[%s3 + $0x70] sm:$0xff]
      %v360 = vld [vmem:[%s3 + $0x78] sm:$0xff]
      %v361 = vld [vmem:[%s3 + $0x80] sm:$0xff]
      %v362 = vld [vmem:[%s3 + $0x88] sm:$0xff]
      %v363 = vld [vmem:[%s3 + $0x90] sm:$0xff]
      %v364 = vld [vmem:[%s3 + $0x98] sm:$0xff]
      %v365 = vld [vmem:[%s3 + $0xa0] sm:$0xff]
      %v366 = vld [vmem:[%s3 + $0xa8] sm:$0xff]
      %v367 = vld [vmem:[%s3 + $0xb0] sm:$0xff]
      %v368 = vld [vmem:[%s3 + $0xb8] sm:$0xff]
      %v369 = vld [vmem:[%s3 + $0xc0] sm:$0xff]
      %v370 = vld [vmem:[%s3 + $0xc8] sm:$0xff]
      %v371 = vld [vmem:[%s3 + $0xd0] sm:$0xff]
      %v372 = vld [vmem:[%s3 + $0xd8] sm:$0xff]
      %v373 = vld [vmem:[%s3 + $0xe0] sm:$0xff]
      %v374 = vld [vmem:[%s3 + $0xe8] sm:$0xff]
      %v375 = vld [vmem:[%s3 + $0xf0] sm:$0xff]
      %v376 = vld [vmem:[%s3 + $0xf8] sm:$0xff]
      %v377 = vld [vmem:[%s3 + $0x100] sm:$0xff]
      %v378 = vld [vmem:[%s3 + $0x108] sm:$0xff]
      %v379 = vld [vmem:[%s3 + $0x110] sm:$0xff]
      %v380 = vld [vmem:[%s3 + $0x118] sm:$0xff]
      %v381 = vld [vmem:[%s3 + $0x120] sm:$0xff]
      %v382 = vld [vmem:[%s3 + $0x128] sm:$0xff]
      %v383 = vld [vmem:[%s3 + $0x130] sm:$0xff]
      %v384 = vld [vmem:[%s3 + $0x138] sm:$0xff]
      %v385 = vld [vmem:[%s3 + $0x140] sm:$0xff]
      %v386 = vld [vmem:[%s3 + $0x148] sm:$0xff]
      %v387 = vld [vmem:[%s3 + $0x150] sm:$0xff]
      %v388 = vld [vmem:[%s3 + $0x158] sm:$0xff]
      %v389 = vld [vmem:[%s3 + $0x160] sm:$0xff]
      %v390 = vld [vmem:[%s3 + $0x168] sm:$0xff]
      %v391 = vld [vmem:[%s3 + $0x170] sm:$0xff]
      %v392 = vld [vmem:[%s3 + $0x178] sm:$0xff]
      %v393 = vld [vmem:[%s3 + $0x180] sm:$0xff]
      %v394 = vld [vmem:[%s3 + $0x188] sm:$0xff]
      %v395 = vld [vmem:[%s3 + $0x190] sm:$0xff]
      %v396 = vld [vmem:[%s3 + $0x198] sm:$0xff]
      %v397 = vld [vmem:[%s3 + $0x1a0] sm:$0xff]
      %v398 = vld [vmem:[%s3 + $0x1a8] sm:$0xff]
      %v399 = vld [vmem:[%s3 + $0x1b0] sm:$0xff]
      %v400 = vld [vmem:[%s3 + $0x1b8] sm:$0xff]
      %v401 = vld [vmem:[%s3 + $0x1c0] sm:$0xff]
      %v402 = vld [vmem:[%s3 + $0x1c8] sm:$0xff]
      %v403 = vld [vmem:[%s3 + $0x1d0] sm:$0xff]
      %v404 = vld [vmem:[%s3 + $0x1d8] sm:$0xff]
      %v405 = vld [vmem:[%s3 + $0x1e0] sm:$0xff]
      %v406 = vld [vmem:[%s3 + $0x1e8] sm:$0xff]
      %v407 = vld [vmem:[%s3 + $0x1f0] sm:$0xff]
      %v408 = vld [vmem:[%s3 + $0x1f8] sm:$0xff]
      %v409 = vld [vmem:[%s3 + $0x200] sm:$0xff]
      %v410 = vld [vmem:[%s3 + $0x208] sm:$0xff]
      %v411 = vld [vmem:[%s3 + $0x210] sm:$0xff]
      %v412 = vld [vmem:[%s3 + $0x218] sm:$0xff]
      %v413 = vld [vmem:[%s3 + $0x220] sm:$0xff]
      %v414 = vld [vmem:[%s3 + $0x228] sm:$0xff]
      %v415 = vld [vmem:[%s3 + $0x230] sm:$0xff]
      %v416 = vld [vmem:[%s3 + $0x238] sm:$0xff]
      %v417 = vld [vmem:[%s3 + $0x240] sm:$0xff]
      %v418 = vld [vmem:[%s3 + $0x248] sm:$0xff]
      %v419 = vld [vmem:[%s3 + $0x250] sm:$0xff]
      %v420 = vld [vmem:[%s3 + $0x258] sm:$0xff]
      %v421 = vld [vmem:[%s3 + $0x260] sm:$0xff]
      %v422 = vld [vmem:[%s3 + $0x268] sm:$0xff]
      %v423 = vld [vmem:[%s3 + $0x270] sm:$0xff]
      %v424 = vld [vmem:[%s3 + $0x278] sm:$0xff]
      %v425 = vld [vmem:[%s4] sm:$0xff]
      %v426 = vld [vmem:[%s5] sm:$0x1]
      %v427 = vld [vmem:[#allocation2] sm:$0x3]
      %v428 = vld [vmem:[%s313] sm:$0xff]
      %v429 = vld [vmem:[%s313 + $0x8] sm:$0x3]
      %430 = vmatprep.subr.mxu0 %v346
      %431 = vmatpush1.msra.mxu0 %v345
      %432 = vmatprep.subr.mxu0 %v351
      %433 = vmatpush1.msra.mxu0 %v350
      %434 = vmatprep.subr.mxu0 %v356
      %435 = vmatpush1.msra.mxu0 %v355
      %436 = vmatprep.subr.mxu0 %v361
      %437 = vmatpush1.msra.mxu0 %v360
      %438 = vmatprep.subr.mxu0 %v366
      %439 = vmatpush1.msra.mxu0 %v365
      %440 = vmatprep.subr.mxu0 %v371
      %441 = vmatpush1.msra.mxu0 %v370
      %442 = vmatprep.subr.mxu0 %v376
      %443 = vmatpush1.msra.mxu0 %v375
      %444 = vmatprep.subr.mxu0 %v381
      %445 = vmatpush1.msra.mxu0 %v380
      %446 = vmatprep.subr.mxu0 %v386
      %447 = vmatpush1.msra.mxu0 %v385
      %448 = vmatprep.subr.mxu0 %v391
      %449 = vmatpush1.msra.mxu0 %v390
      %450 = vmatprep.subr.mxu0 %v396
      %451 = vmatpush1.msra.mxu0 %v395
      %452 = vmatprep.subr.mxu0 %v401
      %453 = vmatpush1.msra.mxu0 %v400
      %454 = vmatprep.subr.mxu0 %v406
      %455 = vmatpush1.msra.mxu0 %v405
      %456 = vmatprep.subr.mxu0 %v411
      %457 = vmatpush1.msra.mxu0 %v410
      %458 = vmatprep.subr.mxu0 %v416
      %459 = vmatpush1.msra.mxu0 %v415
      %460 = vmatprep.subr.mxu0 %v421
      %461 = vmatpush1.msra.mxu0 %v420
      %462 = vmatprep.subr.mxu0 0.0
      %463 = vmatpush1.msra.mxu0 0.0
      %464 = vmatprep.subr.mxu0 0.0
      %465 = vmatpush1.msra.mxu0 0.0
      %466 = vmatprep.subr.mxu0 0.0
      %467 = vmatpush1.msra.mxu0 0.0
      %468 = vmatprep.subr.mxu0 0.0
      %469 = vmatpush1.msra.mxu0 0.0
      %470 = vmatprep.subr.mxu0 0.0
      %471 = vmatpush1.msra.mxu0 0.0
      %472 = vmatprep.subr.mxu0 0.0
      %473 = vmatpush1.msra.mxu0 0.0
      %474 = vmatprep.subr.mxu0 0.0
      %475 = vmatpush1.msra.mxu0 0.0
      %476 = vmatprep.subr.mxu0 0.0
      %477 = vmatpush1.msra.mxu0 0.0
      %478 = vmatprep.subr.mxu0 0.0
      %479 = vmatpush1.msra.mxu0 0.0
      %480 = vmatprep.subr.mxu0 0.0
      %481 = vmatpush1.msra.mxu0 0.0
      %482 = vmatprep.subr.mxu0 0.0
      %483 = vmatpush1.msra.mxu0 0.0
      %484 = vmatprep.subr.mxu0 0.0
      %485 = vmatpush1.msra.mxu0 0.0
      %486 = vmatprep.subr.mxu0 0.0
      %487 = vmatpush1.msra.mxu0 0.0
      %488 = vmatprep.subr.mxu0 0.0
      %489 = vmatpush1.msra.mxu0 0.0
      %490 = vmatprep.subr.mxu0 0.0
      %491 = vmatpush1.msra.mxu0 0.0
      %492 = vmatprep.subr.mxu0 0.0
      %493 = vmatpush1.msra.mxu0 0.0
      %494 = vmatprep.mubr.f32.mxu0 0.0
      %495 = vmatmul.mubr.f32.gmra.mrb[0].mxu0 %v427
      %v496 = vpop.f32.mrb[0].mxu0
      %v497 = vadd.f32 0.0, %v496
      %v498 = vpop.f32.mrb[0].mxu0
      %v499 = vadd.f32 0.0, %v498
      %500 = vdwg.mxu0
      %501 = vmatprep.subr.mxu0 %v348
      %502 = vmatpush1.msra.mxu0 %v347
      %503 = vmatprep.subr.mxu0 %v353
      %504 = vmatpush1.msra.mxu0 %v352
      %505 = vmatprep.subr.mxu0 %v358
      %506 = vmatpush1.msra.mxu0 %v357
      %507 = vmatprep.subr.mxu0 %v363
      %508 = vmatpush1.msra.mxu0 %v362
      %509 = vmatprep.subr.mxu0 %v368
      %510 = vmatpush1.msra.mxu0 %v367
      %511 = vmatprep.subr.mxu0 %v373
      %512 = vmatpush1.msra.mxu0 %v372
      %513 = vmatprep.subr.mxu0 %v378
      %514 = vmatpush1.msra.mxu0 %v377
      %515 = vmatprep.subr.mxu0 %v383
      %516 = vmatpush1.msra.mxu0 %v382
      %517 = vmatprep.subr.mxu0 %v388
      %518 = vmatpush1.msra.mxu0 %v387
      %519 = vmatprep.subr.mxu0 %v393
      %520 = vmatpush1.msra.mxu0 %v392
      %521 = vmatprep.subr.mxu0 %v398
      %522 = vmatpush1.msra.mxu0 %v397
      %523 = vmatprep.subr.mxu0 %v403
      %524 = vmatpush1.msra.mxu0 %v402
      %525 = vmatprep.subr.mxu0 %v408
      %526 = vmatpush1.msra.mxu0 %v407
      %527 = vmatprep.subr.mxu0 %v413
      %528 = vmatpush1.msra.mxu0 %v412
      %529 = vmatprep.subr.mxu0 %v418
      %530 = vmatpush1.msra.mxu0 %v417
      %531 = vmatprep.subr.mxu0 %v423
      %532 = vmatpush1.msra.mxu0 %v422
      %533 = vmatprep.subr.mxu0 0.0
      %534 = vmatpush1.msra.mxu0 0.0
      %535 = vmatprep.subr.mxu0 0.0
      %536 = vmatpush1.msra.mxu0 0.0
      %537 = vmatprep.subr.mxu0 0.0
      %538 = vmatpush1.msra.mxu0 0.0
      %539 = vmatprep.subr.mxu0 0.0
      %540 = vmatpush1.msra.mxu0 0.0
      %541 = vmatprep.subr.mxu0 0.0
      %542 = vmatpush1.msra.mxu0 0.0
      %543 = vmatprep.subr.mxu0 0.0
      %544 = vmatpush1.msra.mxu0 0.0
      %545 = vmatprep.subr.mxu0 0.0
      %546 = vmatpush1.msra.mxu0 0.0
      %547 = vmatprep.subr.mxu0 0.0
      %548 = vmatpush1.msra.mxu0 0.0
      %549 = vmatprep.subr.mxu0 0.0
      %550 = vmatpush1.msra.mxu0 0.0
      %551 = vmatprep.subr.mxu0 0.0
      %552 = vmatpush1.msra.mxu0 0.0
      %553 = vmatprep.subr.mxu0 0.0
      %554 = vmatpush1.msra.mxu0 0.0
      %555 = vmatprep.subr.mxu0 0.0
      %556 = vmatpush1.msra.mxu0 0.0
      %557 = vmatprep.subr.mxu0 0.0
      %558 = vmatpush1.msra.mxu0 0.0
      %559 = vmatprep.subr.mxu0 0.0
      %560 = vmatpush1.msra.mxu0 0.0
      %561 = vmatprep.subr.mxu0 0.0
      %562 = vmatpush1.msra.mxu0 0.0
      %563 = vmatprep.subr.mxu0 0.0
      %564 = vmatpush1.msra.mxu0 0.0
      %565 = vmatprep.mubr.f32.mxu0 0.0
      %566 = vmatmul.mubr.f32.gmra.mrb[0].mxu0 %v427
      %v567 = vpop.f32.mrb[0].mxu0
      %v568 = vadd.f32 0.0, %v567
      %v569 = vpop.f32.mrb[0].mxu0
      %v570 = vadd.f32 0.0, %v569
      %571 = vdwg.mxu0
      %572 = vmatprep.subr.mxu0 0.0
      %573 = vmatpush1.msra.mxu0 %v349
      %574 = vmatprep.subr.mxu0 0.0
      %575 = vmatpush1.msra.mxu0 %v354
      %576 = vmatprep.subr.mxu0 0.0
      %577 = vmatpush1.msra.mxu0 %v359
      %578 = vmatprep.subr.mxu0 0.0
      %579 = vmatpush1.msra.mxu0 %v364
      %580 = vmatprep.subr.mxu0 0.0
      %581 = vmatpush1.msra.mxu0 %v369
      %582 = vmatprep.subr.mxu0 0.0
      %583 = vmatpush1.msra.mxu0 %v374
      %584 = vmatprep.subr.mxu0 0.0
      %585 = vmatpush1.msra.mxu0 %v379
      %586 = vmatprep.subr.mxu0 0.0
      %587 = vmatpush1.msra.mxu0 %v384
      %588 = vmatprep.subr.mxu0 0.0
      %589 = vmatpush1.msra.mxu0 %v389
      %590 = vmatprep.subr.mxu0 0.0
      %591 = vmatpush1.msra.mxu0 %v394
      %592 = vmatprep.subr.mxu0 0.0
      %593 = vmatpush1.msra.mxu0 %v399
      %594 = vmatprep.subr.mxu0 0.0
      %595 = vmatpush1.msra.mxu0 %v404
      %596 = vmatprep.subr.mxu0 0.0
      %597 = vmatpush1.msra.mxu0 %v409
      %598 = vmatprep.subr.mxu0 0.0
      %599 = vmatpush1.msra.mxu0 %v414
      %600 = vmatprep.subr.mxu0 0.0
      %601 = vmatpush1.msra.mxu0 %v419
      %602 = vmatprep.subr.mxu0 0.0
      %603 = vmatpush1.msra.mxu0 %v424
      %604 = vmatprep.subr.mxu0 0.0
      %605 = vmatpush1.msra.mxu0 0.0
      %606 = vmatprep.subr.mxu0 0.0
      %607 = vmatpush1.msra.mxu0 0.0
      %608 = vmatprep.subr.mxu0 0.0
      %609 = vmatpush1.msra.mxu0 0.0
      %610 = vmatprep.subr.mxu0 0.0
      %611 = vmatpush1.msra.mxu0 0.0
      %612 = vmatprep.subr.mxu0 0.0
      %613 = vmatpush1.msra.mxu0 0.0
      %614 = vmatprep.subr.mxu0 0.0
      %615 = vmatpush1.msra.mxu0 0.0
      %616 = vmatprep.subr.mxu0 0.0
      %617 = vmatpush1.msra.mxu0 0.0
      %618 = vmatprep.subr.mxu0 0.0
      %619 = vmatpush1.msra.mxu0 0.0
      %620 = vmatprep.subr.mxu0 0.0
      %621 = vmatpush1.msra.mxu0 0.0
      %622 = vmatprep.subr.mxu0 0.0
      %623 = vmatpush1.msra.mxu0 0.0
      %624 = vmatprep.subr.mxu0 0.0
      %625 = vmatpush1.msra.mxu0 0.0
      %626 = vmatprep.subr.mxu0 0.0
      %627 = vmatpush1.msra.mxu0 0.0
      %628 = vmatprep.subr.mxu0 0.0
      %629 = vmatpush1.msra.mxu0 0.0
      %630 = vmatprep.subr.mxu0 0.0
      %631 = vmatpush1.msra.mxu0 0.0
      %632 = vmatprep.subr.mxu0 0.0
      %633 = vmatpush1.msra.mxu0 0.0
      %634 = vmatprep.subr.mxu0 0.0
      %635 = vmatpush1.msra.mxu0 0.0
      %636 = vmatprep.mubr.f32.mxu0 0.0
      %637 = vmatmul.mubr.f32.gmra.mrb[0].mxu0 %v427
      %v638 = vpop.f32.mrb[0].mxu0
      %v639 = vadd.f32 0.0, %v638
      %v640 = vpop.f32.mrb[0].mxu0
      %641 = vdwg.mxu0
      %v647 = vcombine.low %v497, %v499
      %v648 = vcombine.low %v568, %v570
      %v650 = vunpack.c.l.s4 1983009808
      %v651 = vunpack.c.0.s8 %v650
      %v652 = vlaneseq
      %v653 = vshrl.u32 %v652, 7
      %v654 = vsub.s32 %v651, %v653
      %v655 = vrot.slane %v647, %v654
      %v657 = vunpack.c.l.s4 1983009808
      %v658 = vunpack.c.0.s8 %v657
      %v659 = vlaneseq
      %v660 = vshrl.u32 %v659, 7
      %v661 = vsub.s32 %v658, %v660
      %v662 = vrot.slane %v648, %v661
      %v663 = vcombine.low %v655, %v662
      %v665 = vunpack.c.l.s4 1983009808
      %v666 = vunpack.c.0.s8 %v665
      %v667 = vlaneseq
      %v668 = vshrl.u32 %v667, 7
      %v669 = vsub.s32 %v666, %v668
      %v670 = vrot.slane %v639, %v669
      %v673 = vadd.f32 %v428, %v663
      %v674 = vadd.f32 %v429, %v670
      %v675 = vxor.u32 %v673, 2147483648
      %v676 = vmul.f32 %v675, 1.442695
      %v677 = vpow.pop %v676
      %v678 = vadd.f32 %v677, 1.0
      %v679 = vrcp.pop %v678
      %v680 = vmul.f32 1.0, %v679
      %v682 = vrot.slane %v673, 2
      %v684 = vxor.u32 %v682, 2147483648
      %v685 = vmul.f32 %v684, 1.442695
      %v686 = vpow.pop %v685
      %v687 = vadd.f32 %v686, 1.0
      %v688 = vrcp.pop %v687
      %v689 = vmul.f32 1.0, %v688
      %v690 = vrot.slane %v673, 4
      %v692 = vtanh.pop %v690
      %v693 = vmul.f32 %v680, %v692
      %v694 = vrot.slane %v673, 6
      %v696 = vxor.u32 %v694, 2147483648
      %v697 = vmul.f32 %v696, 1.442695
      %v698 = vpow.pop %v697
      %v699 = vadd.f32 %v698, 1.0
      %v700 = vrcp.pop %v699
      %v701 = vmul.f32 1.0, %v700
      %v702 = vxor.u32 %v674, 2147483648
      %v703 = vmul.f32 %v702, 1.442695
      %v704 = vpow.pop %v703
      %v705 = vadd.f32 %v704, 1.0
      %v706 = vrcp.pop %v705
      %v707 = vmul.f32 1.0, %v706
      %v710 = vunpack.c.l.s4 1966171168
      %v711 = vunpack.c.0.s8 %v710
      %v712 = vlaneseq
      %v713 = vshrl.u32 %v712, 7
      %v714 = vsub.s32 %v711, %v713
      %v715 = vrot.slane %v689, %v714
      %v716 = vcombine.high %v715, %v715
      %v717 = vlaneseq
      %v718 = vshrl.u32 %v717, 7
      %v719 = vsub.s32 0, %v718
      %v720 = vrot.slane %v707, %v719
      %722 = vbcast.lane.b32.xlu0 %v720, 256
      %v723 = vpop.permute.xlu0 %722
      %v724 = vlaneseq
      %v725 = vshrl.u32 %v724, 7
      %v726 = vsub.s32 1, %v725
      %v727 = vrot.slane %v707, %v726
      %729 = vbcast.lane.b32.xlu0 %v727, 256
      %v730 = vpop.permute.xlu0 %729
      %v731 = vlaneseq
      %v732 = vshrl.u32 %v731, 7
      %v733 = vsub.s32 0, %v732
      %v734 = vrot.slane %v715, %v733
      %v735 = vlaneseq
      %v736 = vshrl.u32 %v735, 7
      %v737 = vsub.s32 0, %v736
      %v738 = vrot.slane %v716, %v737
      %v741 = vmul.f32 %v734, %v723
      %v742 = vmul.f32 %v738, %v730
      %v745 = vunpack.c.l.s4 1966171168
      %v746 = vunpack.c.0.s8 %v745
      %v747 = vlaneseq
      %v748 = vshrl.u32 %v747, 7
      %v749 = vsub.s32 %v746, %v748
      %v750 = vrot.slane %v693, %v749
      %v751 = vcombine.high %v750, %v750
      %v752 = vld [vmem:[%s319] sm:$0xff]
      %v753 = vld [vmem:[%s325] sm:$0xff]
      %v754 = vld [vmem:[#allocation3] sm:$0xff]
      %v755 = vld [vmem:[#allocation3 + $0x8] sm:$0xff]
      %v756 = vmul.f32 %v741, %v754
      %v757 = vmul.f32 %v742, %v755
      %v758 = vlaneseq
      %v759 = vshrl.u32 %v758, 7
      %v760 = vsub.s32 0, %v759
      %v761 = vrot.slane %v750, %v760
      %v762 = vlaneseq
      %v763 = vshrl.u32 %v762, 7
      %v764 = vsub.s32 0, %v763
      %v765 = vrot.slane %v751, %v764
      %769 = vset.pattern.permute.xlu0 0
      %770 = vperm.xlu0 %769, %v752
      %v771 = vpop.permute.xlu0 %770
      %v773 = vmul.f32 %v761, %v771
      %v774 = vmul.f32 %v765, %v771
      %v775 = vadd.f32 %v756, %v773
      %v776 = vadd.f32 %v757, %v774
      %v777 = vld [vmem:[#allocation4] sm:$0xff]
      %v778 = vld [vmem:[#allocation4 + $0x8] sm:$0xff]
      %v779 = vmul.f32 %v741, %v777
      %v780 = vmul.f32 %v742, %v778
      %782 = vset.pattern.permute.xlu0 0
      %783 = vperm.xlu0 %782, %v753
      %v784 = vpop.permute.xlu0 %783
      %v786 = vmul.f32 %v761, %v784
      %v787 = vmul.f32 %v765, %v784
      %v788 = vadd.f32 %v779, %v786
      %v789 = vadd.f32 %v780, %v787
      %790 = vst [vmem:[#allocation3] sm:$0xff] %v775
      %791 = vst [vmem:[#allocation3 + $0x8] sm:$0xff] %v776
      %792 = vst [vmem:[#allocation4] sm:$0xff] %v788
      %793 = vst [vmem:[#allocation4 + $0x8] sm:$0xff] %v789
      %v794 = vmul.f32 %v775, %v775
      %v795 = vmul.f32 %v776, %v776
      %v796 = vmul.f32 %v788, %v788
      %v797 = vmul.f32 %v789, %v789
      %v798 = vadd.f32 %v794, %v796
      %v799 = vadd.f32 %v795, %v797
      %v800 = vrsqrt.pop %v798
      %v801 = vmul.f32 %v798, %v800
      %vm802 = vcmp.eq.f32.partialorder %v798, inf
      %v803 = vsel %vm802, %v798, %v801
      %vm804 = vcmp.eq.f32.partialorder %v798, 0.0
      %v805 = vand.u32 %v798, 2147483648
      %v806 = vsel %vm804, %v805, %v803
      %v807 = vrsqrt.pop %v799
      %v808 = vmul.f32 %v799, %v807
      %vm809 = vcmp.eq.f32.partialorder %v799, inf
      %v810 = vsel %vm809, %v799, %v808
      %vm811 = vcmp.eq.f32.partialorder %v799, 0.0
      %v812 = vand.u32 %v799, 2147483648
      %v813 = vsel %vm811, %v812, %v810
      %815 = vset.pattern.permute.xlu0 0
      %816 = vperm.xlu0 %815, %v425
      %v817 = vpop.permute.xlu0 %816
      %v819 = vmul.f32 %v806, %v817
      %v820 = vmul.f32 %v813, %v817
      %v821 = vrot.slane %v819, 4
      %v822 = vadd.f32 %v819, %v821
      %v823 = vrot.slane %v822, 2
      %v824 = vadd.f32 %v822, %v823
      %v825 = vrot.slane %v824, 1
      %v826 = vadd.f32 %v824, %v825
      %v827 = vrot.slane %v820, 4
      %v828 = vadd.f32 %v820, %v827
      %v829 = vrot.slane %v828, 2
      %v830 = vadd.f32 %v828, %v829
      %v831 = vrot.slane %v830, 1
      %v832 = vadd.f32 %v830, %v831
      %v834 = vlaneseq
      %v835 = vshrl.u32 %v834, 7
      %v836 = vsub.s32 0, %v835
      %v837 = vrot.slane %v426, %v836
      %v839 = vadd.f32 %v826, %v837
      %v840 = vadd.f32 %v832, %v837
      %v841 = vtanh.pop %v839
      %v842 = vtanh.pop %v840
      %v846 = vunpack.c.l.s4 1983009808
      %v847 = vunpack.c.0.s8 %v846
      %v848 = vlaneseq
      %v849 = vshrl.u32 %v848, 7
      %v850 = vsub.s32 %v847, %v849
      %v851 = vrot.slane %v841, %v850
      %v853 = vunpack.c.l.s4 1983009808
      %v854 = vunpack.c.0.s8 %v853
      %v855 = vlaneseq
      %v856 = vshrl.u32 %v855, 7
      %v857 = vsub.s32 %v854, %v856
      %v858 = vrot.slane %v842, %v857
      %vm859 = vcmask 1044484
      %v860 = vsel %vm859, %v851, %v851
      %vm861 = vcmask 1046534
      %v862 = vsel %vm861, %v851, %v860
      %v863 = vrot.slane %v858, 7
      %vm864 = vcmask 1041409
      %v865 = vsel %vm864, %v863, %v862
      %vm866 = vcmask 1043459
      %v867 = vsel %vm866, %v863, %v865
      %vm868 = vcmask 1045509
      %v869 = vsel %vm868, %v863, %v867
      %vm870 = vcmask 1047559
      %v871 = vsel %vm870, %v863, %v869
      %v873 = vmul.f32 %v701, %v871
      %874 = vst [vmem:[#allocation2] sm:$0x3] %v873
      %875 = vst [vmem:[%s334] sm:$0x3] %v873
      %v876 = vld [vmem:[#allocation2] sm:$0x3]
      %s877 = scalar_lea.vmem %s313, 10
      %v878 = vld [vmem:[%s877] sm:$0xff]
      %v879 = vld [vmem:[%s877 + $0x8] sm:$0x3]
      %880 = vmatprep.subr.mxu0 %v346
      %881 = vmatpush1.msra.mxu0 %v345
      %882 = vmatprep.subr.mxu0 %v351
      %883 = vmatpush1.msra.mxu0 %v350
      %884 = vmatprep.subr.mxu0 %v356
      %885 = vmatpush1.msra.mxu0 %v355
      %886 = vmatprep.subr.mxu0 %v361
      %887 = vmatpush1.msra.mxu0 %v360
      %888 = vmatprep.subr.mxu0 %v366
      %889 = vmatpush1.msra.mxu0 %v365
      %890 = vmatprep.subr.mxu0 %v371
      %891 = vmatpush1.msra.mxu0 %v370
      %892 = vmatprep.subr.mxu0 %v376
      %893 = vmatpush1.msra.mxu0 %v375
      %894 = vmatprep.subr.mxu0 %v381
      %895 = vmatpush1.msra.mxu0 %v380
      %896 = vmatprep.subr.mxu0 %v386
      %897 = vmatpush1.msra.mxu0 %v385
      %898 = vmatprep.subr.mxu0 %v391
      %899 = vmatpush1.msra.mxu0 %v390
      %900 = vmatprep.subr.mxu0 %v396
      %901 = vmatpush1.msra.mxu0 %v395
      %902 = vmatprep.subr.mxu0 %v401
      %903 = vmatpush1.msra.mxu0 %v400
      %904 = vmatprep.subr.mxu0 %v406
      %905 = vmatpush1.msra.mxu0 %v405
      %906 = vmatprep.subr.mxu0 %v411
      %907 = vmatpush1.msra.mxu0 %v410
      %908 = vmatprep.subr.mxu0 %v416
      %909 = vmatpush1.msra.mxu0 %v415
      %910 = vmatprep.subr.mxu0 %v421
      %911 = vmatpush1.msra.mxu0 %v420
      %912 = vmatprep.subr.mxu0 0.0
      %913 = vmatpush1.msra.mxu0 0.0
      %914 = vmatprep.subr.mxu0 0.0
      %915 = vmatpush1.msra.mxu0 0.0
      %916 = vmatprep.subr.mxu0 0.0
      %917 = vmatpush1.msra.mxu0 0.0
      %918 = vmatprep.subr.mxu0 0.0
      %919 = vmatpush1.msra.mxu0 0.0
      %920 = vmatprep.subr.mxu0 0.0
      %921 = vmatpush1.msra.mxu0 0.0
      %922 = vmatprep.subr.mxu0 0.0
      %923 = vmatpush1.msra.mxu0 0.0
      %924 = vmatprep.subr.mxu0 0.0
      %925 = vmatpush1.msra.mxu0 0.0
      %926 = vmatprep.subr.mxu0 0.0
      %927 = vmatpush1.msra.mxu0 0.0
      %928 = vmatprep.subr.mxu0 0.0
      %929 = vmatpush1.msra.mxu0 0.0
      %930 = vmatprep.subr.mxu0 0.0
      %931 = vmatpush1.msra.mxu0 0.0
      %932 = vmatprep.subr.mxu0 0.0
      %933 = vmatpush1.msra.mxu0 0.0
      %934 = vmatprep.subr.mxu0 0.0
      %935 = vmatpush1.msra.mxu0 0.0
      %936 = vmatprep.subr.mxu0 0.0
      %937 = vmatpush1.msra.mxu0 0.0
      %938 = vmatprep.subr.mxu0 0.0
      %939 = vmatpush1.msra.mxu0 0.0
      %940 = vmatprep.subr.mxu0 0.0
      %941 = vmatpush1.msra.mxu0 0.0
      %942 = vmatprep.subr.mxu0 0.0
      %943 = vmatpush1.msra.mxu0 0.0
      %944 = vmatprep.mubr.f32.mxu0 0.0
      %945 = vmatmul.mubr.f32.gmra.mrb[0].mxu0 %v876
      %v946 = vpop.f32.mrb[0].mxu0
      %v947 = vadd.f32 0.0, %v946
      %v948 = vpop.f32.mrb[0].mxu0
      %v949 = vadd.f32 0.0, %v948
      %950 = vdwg.mxu0
      %951 = vmatprep.subr.mxu0 %v348
      %952 = vmatpush1.msra.mxu0 %v347
      %953 = vmatprep.subr.mxu0 %v353
      %954 = vmatpush1.msra.mxu0 %v352
      %955 = vmatprep.subr.mxu0 %v358
      %956 = vmatpush1.msra.mxu0 %v357
      %957 = vmatprep.subr.mxu0 %v363
      %958 = vmatpush1.msra.mxu0 %v362
      %959 = vmatprep.subr.mxu0 %v368
      %960 = vmatpush1.msra.mxu0 %v367
      %961 = vmatprep.subr.mxu0 %v373
      %962 = vmatpush1.msra.mxu0 %v372
      %963 = vmatprep.subr.mxu0 %v378
      %964 = vmatpush1.msra.mxu0 %v377
      %965 = vmatprep.subr.mxu0 %v383
      %966 = vmatpush1.msra.mxu0 %v382
      %967 = vmatprep.subr.mxu0 %v388
      %968 = vmatpush1.msra.mxu0 %v387
      %969 = vmatprep.subr.mxu0 %v393
      %970 = vmatpush1.msra.mxu0 %v392
      %971 = vmatprep.subr.mxu0 %v398
      %972 = vmatpush1.msra.mxu0 %v397
      %973 = vmatprep.subr.mxu0 %v403
      %974 = vmatpush1.msra.mxu0 %v402
      %975 = vmatprep.subr.mxu0 %v408
      %976 = vmatpush1.msra.mxu0 %v407
      %977 = vmatprep.subr.mxu0 %v413
      %978 = vmatpush1.msra.mxu0 %v412
      %979 = vmatprep.subr.mxu0 %v418
      %980 = vmatpush1.msra.mxu0 %v417
      %981 = vmatprep.subr.mxu0 %v423
      %982 = vmatpush1.msra.mxu0 %v422
      %983 = vmatprep.subr.mxu0 0.0
      %984 = vmatpush1.msra.mxu0 0.0
      %985 = vmatprep.subr.mxu0 0.0
      %986 = vmatpush1.msra.mxu0 0.0
      %987 = vmatprep.subr.mxu0 0.0
      %988 = vmatpush1.msra.mxu0 0.0
      %989 = vmatprep.subr.mxu0 0.0
      %990 = vmatpush1.msra.mxu0 0.0
      %991 = vmatprep.subr.mxu0 0.0
      %992 = vmatpush1.msra.mxu0 0.0
      %993 = vmatprep.subr.mxu0 0.0
      %994 = vmatpush1.msra.mxu0 0.0
      %995 = vmatprep.subr.mxu0 0.0
      %996 = vmatpush1.msra.mxu0 0.0
      %997 = vmatprep.subr.mxu0 0.0
      %998 = vmatpush1.msra.mxu0 0.0
      %999 = vmatprep.subr.mxu0 0.0
      %1000 = vmatpush1.msra.mxu0 0.0
      %1001 = vmatprep.subr.mxu0 0.0
      %1002 = vmatpush1.msra.mxu0 0.0
      %1003 = vmatprep.subr.mxu0 0.0
      %1004 = vmatpush1.msra.mxu0 0.0
      %1005 = vmatprep.subr.mxu0 0.0
      %1006 = vmatpush1.msra.mxu0 0.0
      %1007 = vmatprep.subr.mxu0 0.0
      %1008 = vmatpush1.msra.mxu0 0.0
      %1009 = vmatprep.subr.mxu0 0.0
      %1010 = vmatpush1.msra.mxu0 0.0
      %1011 = vmatprep.subr.mxu0 0.0
      %1012 = vmatpush1.msra.mxu0 0.0
      %1013 = vmatprep.subr.mxu0 0.0
      %1014 = vmatpush1.msra.mxu0 0.0
      %1015 = vmatprep.mubr.f32.mxu0 0.0
      %1016 = vmatmul.mubr.f32.gmra.mrb[0].mxu0 %v876
      %v1017 = vpop.f32.mrb[0].mxu0
      %v1018 = vadd.f32 0.0, %v1017
      %v1019 = vpop.f32.mrb[0].mxu0
      %v1020 = vadd.f32 0.0, %v1019
      %1021 = vdwg.mxu0
      %1022 = vmatprep.subr.mxu0 0.0
      %1023 = vmatpush1.msra.mxu0 %v349
      %1024 = vmatprep.subr.mxu0 0.0
      %1025 = vmatpush1.msra.mxu0 %v354
      %1026 = vmatprep.subr.mxu0 0.0
      %1027 = vmatpush1.msra.mxu0 %v359
      %1028 = vmatprep.subr.mxu0 0.0
      %1029 = vmatpush1.msra.mxu0 %v364
      %1030 = vmatprep.subr.mxu0 0.0
      %1031 = vmatpush1.msra.mxu0 %v369
      %1032 = vmatprep.subr.mxu0 0.0
      %1033 = vmatpush1.msra.mxu0 %v374
      %1034 = vmatprep.subr.mxu0 0.0
      %1035 = vmatpush1.msra.mxu0 %v379
      %1036 = vmatprep.subr.mxu0 0.0
      %1037 = vmatpush1.msra.mxu0 %v384
      %1038 = vmatprep.subr.mxu0 0.0
      %1039 = vmatpush1.msra.mxu0 %v389
      %1040 = vmatprep.subr.mxu0 0.0
      %1041 = vmatpush1.msra.mxu0 %v394
      %1042 = vmatprep.subr.mxu0 0.0
      %1043 = vmatpush1.msra.mxu0 %v399
      %1044 = vmatprep.subr.mxu0 0.0
      %1045 = vmatpush1.msra.mxu0 %v404
      %1046 = vmatprep.subr.mxu0 0.0
      %1047 = vmatpush1.msra.mxu0 %v409
      %1048 = vmatprep.subr.mxu0 0.0
      %1049 = vmatpush1.msra.mxu0 %v414
      %1050 = vmatprep.subr.mxu0 0.0
      %1051 = vmatpush1.msra.mxu0 %v419
      %1052 = vmatprep.subr.mxu0 0.0
      %1053 = vmatpush1.msra.mxu0 %v424
      %1054 = vmatprep.subr.mxu0 0.0
      %1055 = vmatpush1.msra.mxu0 0.0
      %1056 = vmatprep.subr.mxu0 0.0
      %1057 = vmatpush1.msra.mxu0 0.0
      %1058 = vmatprep.subr.mxu0 0.0
      %1059 = vmatpush1.msra.mxu0 0.0
      %1060 = vmatprep.subr.mxu0 0.0
      %1061 = vmatpush1.msra.mxu0 0.0
      %1062 = vmatprep.subr.mxu0 0.0
      %1063 = vmatpush1.msra.mxu0 0.0
      %1064 = vmatprep.subr.mxu0 0.0
      %1065 = vmatpush1.msra.mxu0 0.0
      %1066 = vmatprep.subr.mxu0 0.0
      %1067 = vmatpush1.msra.mxu0 0.0
      %1068 = vmatprep.subr.mxu0 0.0
      %1069 = vmatpush1.msra.mxu0 0.0
      %1070 = vmatprep.subr.mxu0 0.0
      %1071 = vmatpush1.msra.mxu0 0.0
      %1072 = vmatprep.subr.mxu0 0.0
      %1073 = vmatpush1.msra.mxu0 0.0
      %1074 = vmatprep.subr.mxu0 0.0
      %1075 = vmatpush1.msra.mxu0 0.0
      %1076 = vmatprep.subr.mxu0 0.0
      %1077 = vmatpush1.msra.mxu0 0.0
      %1078 = vmatprep.subr.mxu0 0.0
      %1079 = vmatpush1.msra.mxu0 0.0
      %1080 = vmatprep.subr.mxu0 0.0
      %1081 = vmatpush1.msra.mxu0 0.0
      %1082 = vmatprep.subr.mxu0 0.0
      %1083 = vmatpush1.msra.mxu0 0.0
      %1084 = vmatprep.subr.mxu0 0.0
      %1085 = vmatpush1.msra.mxu0 0.0
      %1086 = vmatprep.mubr.f32.mxu0 0.0
      %1087 = vmatmul.mubr.f32.gmra.mrb[0].mxu0 %v876
      %v1088 = vpop.f32.mrb[0].mxu0
      %v1089 = vadd.f32 0.0, %v1088
      %v1090 = vpop.f32.mrb[0].mxu0
      %1091 = vdwg.mxu0
      %v1097 = vcombine.low %v947, %v949
      %v1098 = vcombine.low %v1018, %v1020
      %v1100 = vunpack.c.l.s4 1983009808
      %v1101 = vunpack.c.0.s8 %v1100
      %v1102 = vlaneseq
      %v1103 = vshrl.u32 %v1102, 7
      %v1104 = vsub.s32 %v1101, %v1103
      %v1105 = vrot.slane %v1097, %v1104
      %v1107 = vunpack.c.l.s4 1983009808
      %v1108 = vunpack.c.0.s8 %v1107
      %v1109 = vlaneseq
      %v1110 = vshrl.u32 %v1109, 7
      %v1111 = vsub.s32 %v1108, %v1110
      %v1112 = vrot.slane %v1098, %v1111
      %v1113 = vcombine.low %v1105, %v1112
      %v1115 = vunpack.c.l.s4 1983009808
      %v1116 = vunpack.c.0.s8 %v1115
      %v1117 = vlaneseq
      %v1118 = vshrl.u32 %v1117, 7
      %v1119 = vsub.s32 %v1116, %v1118
      %v1120 = vrot.slane %v1089, %v1119
      %v1123 = vadd.f32 %v878, %v1113
      %v1124 = vadd.f32 %v879, %v1120
      %v1125 = vxor.u32 %v1123, 2147483648
      %v1126 = vmul.f32 %v1125, 1.442695
      %v1127 = vpow.pop %v1126
      %v1128 = vadd.f32 %v1127, 1.0
      %v1129 = vrcp.pop %v1128
      %v1130 = vmul.f32 1.0, %v1129
      %v1132 = vrot.slane %v1123, 2
      %v1134 = vxor.u32 %v1132, 2147483648
      %v1135 = vmul.f32 %v1134, 1.442695
      %v1136 = vpow.pop %v1135
      %v1137 = vadd.f32 %v1136, 1.0
      %v1138 = vrcp.pop %v1137
      %v1139 = vmul.f32 1.0, %v1138
      %v1140 = vrot.slane %v1123, 4
      %v1142 = vtanh.pop %v1140
      %v1143 = vmul.f32 %v1130, %v1142
      %v1144 = vrot.slane %v1123, 6
      %v1146 = vxor.u32 %v1144, 2147483648
      %v1147 = vmul.f32 %v1146, 1.442695
      %v1148 = vpow.pop %v1147
      %v1149 = vadd.f32 %v1148, 1.0
      %v1150 = vrcp.pop %v1149
      %v1151 = vmul.f32 1.0, %v1150
      %v1152 = vxor.u32 %v1124, 2147483648
      %v1153 = vmul.f32 %v1152, 1.442695
      %v1154 = vpow.pop %v1153
      %v1155 = vadd.f32 %v1154, 1.0
      %v1156 = vrcp.pop %v1155
      %v1157 = vmul.f32 1.0, %v1156
      %v1160 = vunpack.c.l.s4 1966171168
      %v1161 = vunpack.c.0.s8 %v1160
      %v1162 = vlaneseq
      %v1163 = vshrl.u32 %v1162, 7
      %v1164 = vsub.s32 %v1161, %v1163
      %v1165 = vrot.slane %v1139, %v1164
      %v1166 = vcombine.high %v1165, %v1165
      %v1167 = vlaneseq
      %v1168 = vshrl.u32 %v1167, 7
      %v1169 = vsub.s32 0, %v1168
      %v1170 = vrot.slane %v1157, %v1169
      %1172 = vbcast.lane.b32.xlu0 %v1170, 256
      %v1173 = vpop.permute.xlu0 %1172
      %v1174 = vlaneseq
      %v1175 = vshrl.u32 %v1174, 7
      %v1176 = vsub.s32 1, %v1175
      %v1177 = vrot.slane %v1157, %v1176
      %1179 = vbcast.lane.b32.xlu0 %v1177, 256
      %v1180 = vpop.permute.xlu0 %1179
      %v1181 = vlaneseq
      %v1182 = vshrl.u32 %v1181, 7
      %v1183 = vsub.s32 0, %v1182
      %v1184 = vrot.slane %v1165, %v1183
      %v1185 = vlaneseq
      %v1186 = vshrl.u32 %v1185, 7
      %v1187 = vsub.s32 0, %v1186
      %v1188 = vrot.slane %v1166, %v1187
      %v1191 = vmul.f32 %v1184, %v1173
      %v1192 = vmul.f32 %v1188, %v1180
      %v1195 = vunpack.c.l.s4 1966171168
      %v1196 = vunpack.c.0.s8 %v1195
      %v1197 = vlaneseq
      %v1198 = vshrl.u32 %v1197, 7
      %v1199 = vsub.s32 %v1196, %v1198
      %v1200 = vrot.slane %v1143, %v1199
      %v1201 = vcombine.high %v1200, %v1200
      %s1202 = scalar_lea.vmem %s319, 8
      %v1203 = vld [vmem:[%s1202] sm:$0xff]
      %s1204 = scalar_lea.vmem %s325, 8
      %v1205 = vld [vmem:[%s1204] sm:$0xff]
      %v1206 = vld [vmem:[#allocation3] sm:$0xff]
      %v1207 = vld [vmem:[#allocation3 + $0x8] sm:$0xff]
      %v1208 = vmul.f32 %v1191, %v1206
      %v1209 = vmul.f32 %v1192, %v1207
      %v1210 = vlaneseq
      %v1211 = vshrl.u32 %v1210, 7
      %v1212 = vsub.s32 0, %v1211
      %v1213 = vrot.slane %v1200, %v1212
      %v1214 = vlaneseq
      %v1215 = vshrl.u32 %v1214, 7
      %v1216 = vsub.s32 0, %v1215
      %v1217 = vrot.slane %v1201, %v1216
      %1221 = vset.pattern.permute.xlu0 0
      %1222 = vperm.xlu0 %1221, %v1203
      %v1223 = vpop.permute.xlu0 %1222
      %v1225 = vmul.f32 %v1213, %v1223
      %v1226 = vmul.f32 %v1217, %v1223
      %v1227 = vadd.f32 %v1208, %v1225
      %v1228 = vadd.f32 %v1209, %v1226
      %v1229 = vld [vmem:[#allocation4] sm:$0xff]
      %v1230 = vld [vmem:[#allocation4 + $0x8] sm:$0xff]
      %v1231 = vmul.f32 %v1191, %v1229
      %v1232 = vmul.f32 %v1192, %v1230
      %1234 = vset.pattern.permute.xlu0 0
      %1235 = vperm.xlu0 %1234, %v1205
      %v1236 = vpop.permute.xlu0 %1235
      %v1238 = vmul.f32 %v1213, %v1236
      %v1239 = vmul.f32 %v1217, %v1236
      %v1240 = vadd.f32 %v1231, %v1238
      %v1241 = vadd.f32 %v1232, %v1239
      %1242 = vst [vmem:[#allocation3] sm:$0xff] %v1227
      %1243 = vst [vmem:[#allocation3 + $0x8] sm:$0xff] %v1228
      %1244 = vst [vmem:[#allocation4] sm:$0xff] %v1240
      %1245 = vst [vmem:[#allocation4 + $0x8] sm:$0xff] %v1241
      %v1246 = vmul.f32 %v1227, %v1227
      %v1247 = vmul.f32 %v1228, %v1228
      %v1248 = vmul.f32 %v1240, %v1240
      %v1249 = vmul.f32 %v1241, %v1241
      %v1250 = vadd.f32 %v1246, %v1248
      %v1251 = vadd.f32 %v1247, %v1249
      %v1252 = vrsqrt.pop %v1250
      %v1253 = vmul.f32 %v1250, %v1252
      %vm1254 = vcmp.eq.f32.partialorder %v1250, inf
      %v1255 = vsel %vm1254, %v1250, %v1253
      %vm1256 = vcmp.eq.f32.partialorder %v1250, 0.0
      %v1257 = vand.u32 %v1250, 2147483648
      %v1258 = vsel %vm1256, %v1257, %v1255
      %v1259 = vrsqrt.pop %v1251
      %v1260 = vmul.f32 %v1251, %v1259
      %vm1261 = vcmp.eq.f32.partialorder %v1251, inf
      %v1262 = vsel %vm1261, %v1251, %v1260
      %vm1263 = vcmp.eq.f32.partialorder %v1251, 0.0
      %v1264 = vand.u32 %v1251, 2147483648
      %v1265 = vsel %vm1263, %v1264, %v1262
      %v1266 = vmul.f32 %v1258, %v817
      %v1267 = vmul.f32 %v1265, %v817
      %v1268 = vrot.slane %v1266, 4
      %v1269 = vadd.f32 %v1266, %v1268
      %v1270 = vrot.slane %v1269, 2
      %v1271 = vadd.f32 %v1269, %v1270
      %v1272 = vrot.slane %v1271, 1
      %v1273 = vadd.f32 %v1271, %v1272
      %v1274 = vrot.slane %v1267, 4
      %v1275 = vadd.f32 %v1267, %v1274
      %v1276 = vrot.slane %v1275, 2
      %v1277 = vadd.f32 %v1275, %v1276
      %v1278 = vrot.slane %v1277, 1
      %v1279 = vadd.f32 %v1277, %v1278
      %v1280 = vadd.f32 %v1273, %v837
      %v1281 = vadd.f32 %v1279, %v837
      %v1282 = vtanh.pop %v1280
      %v1283 = vtanh.pop %v1281
      %v1287 = vunpack.c.l.s4 1983009808
      %v1288 = vunpack.c.0.s8 %v1287
      %v1289 = vlaneseq
      %v1290 = vshrl.u32 %v1289, 7
      %v1291 = vsub.s32 %v1288, %v1290
      %v1292 = vrot.slane %v1282, %v1291
      %v1294 = vunpack.c.l.s4 1983009808
      %v1295 = vunpack.c.0.s8 %v1294
      %v1296 = vlaneseq
      %v1297 = vshrl.u32 %v1296, 7
      %v1298 = vsub.s32 %v1295, %v1297
      %v1299 = vrot.slane %v1283, %v1298
      %v1300 = vsel %vm859, %v1292, %v1292
      %v1301 = vsel %vm861, %v1292, %v1300
      %v1302 = vrot.slane %v1299, 7
      %v1303 = vsel %vm864, %v1302, %v1301
      %v1304 = vsel %vm866, %v1302, %v1303
      %v1305 = vsel %vm868, %v1302, %v1304
      %v1306 = vsel %vm870, %v1302, %v1305
      %v1308 = vmul.f32 %v1151, %v1306
      %1309 = vst [vmem:[#allocation2] sm:$0x3] %v1308
      %s1310 = scalar_lea.vmem %s334, 2
      %1311 = vst [vmem:[%s1310] sm:$0x3] %v1308
      %v1312 = vld [vmem:[#allocation2] sm:$0x3]
      %s1313 = scalar_lea.vmem %s313, 20
      %v1314 = vld [vmem:[%s1313] sm:$0xff]
      %v1315 = vld [vmem:[%s1313 + $0x8] sm:$0x3]
      %1316 = vmatprep.subr.mxu0 %v346
      %1317 = vmatpush1.msra.mxu0 %v345
      %1318 = vmatprep.subr.mxu0 %v351
      %1319 = vmatpush1.msra.mxu0 %v350
      %1320 = vmatprep.subr.mxu0 %v356
      %1321 = vmatpush1.msra.mxu0 %v355
      %1322 = vmatprep.subr.mxu0 %v361
      %1323 = vmatpush1.msra.mxu0 %v360
      %1324 = vmatprep.subr.mxu0 %v366
      %1325 = vmatpush1.msra.mxu0 %v365
      %1326 = vmatprep.subr.mxu0 %v371
      %1327 = vmatpush1.msra.mxu0 %v370
      %1328 = vmatprep.subr.mxu0 %v376
      %1329 = vmatpush1.msra.mxu0 %v375
      %1330 = vmatprep.subr.mxu0 %v381
      %1331 = vmatpush1.msra.mxu0 %v380
      %1332 = vmatprep.subr.mxu0 %v386
      %1333 = vmatpush1.msra.mxu0 %v385
      %1334 = vmatprep.subr.mxu0 %v391
      %1335 = vmatpush1.msra.mxu0 %v390
      %1336 = vmatprep.subr.mxu0 %v396
      %1337 = vmatpush1.msra.mxu0 %v395
      %1338 = vmatprep.subr.mxu0 %v401
      %1339 = vmatpush1.msra.mxu0 %v400
      %1340 = vmatprep.subr.mxu0 %v406
      %1341 = vmatpush1.msra.mxu0 %v405
      %1342 = vmatprep.subr.mxu0 %v411
      %1343 = vmatpush1.msra.mxu0 %v410
      %1344 = vmatprep.subr.mxu0 %v416
      %1345 = vmatpush1.msra.mxu0 %v415
      %1346 = vmatprep.subr.mxu0 %v421
      %1347 = vmatpush1.msra.mxu0 %v420
      %1348 = vmatprep.subr.mxu0 0.0
      %1349 = vmatpush1.msra.mxu0 0.0
      %1350 = vmatprep.subr.mxu0 0.0
      %1351 = vmatpush1.msra.mxu0 0.0
      %1352 = vmatprep.subr.mxu0 0.0
      %1353 = vmatpush1.msra.mxu0 0.0
      %1354 = vmatprep.subr.mxu0 0.0
      %1355 = vmatpush1.msra.mxu0 0.0
      %1356 = vmatprep.subr.mxu0 0.0
      %1357 = vmatpush1.msra.mxu0 0.0
      %1358 = vmatprep.subr.mxu0 0.0
      %1359 = vmatpush1.msra.mxu0 0.0
      %1360 = vmatprep.subr.mxu0 0.0
      %1361 = vmatpush1.msra.mxu0 0.0
      %1362 = vmatprep.subr.mxu0 0.0
      %1363 = vmatpush1.msra.mxu0 0.0
      %1364 = vmatprep.subr.mxu0 0.0
      %1365 = vmatpush1.msra.mxu0 0.0
      %1366 = vmatprep.subr.mxu0 0.0
      %1367 = vmatpush1.msra.mxu0 0.0
      %1368 = vmatprep.subr.mxu0 0.0
      %1369 = vmatpush1.msra.mxu0 0.0
      %1370 = vmatprep.subr.mxu0 0.0
      %1371 = vmatpush1.msra.mxu0 0.0
      %1372 = vmatprep.subr.mxu0 0.0
      %1373 = vmatpush1.msra.mxu0 0.0
      %1374 = vmatprep.subr.mxu0 0.0
      %1375 = vmatpush1.msra.mxu0 0.0
      %1376 = vmatprep.subr.mxu0 0.0
      %1377 = vmatpush1.msra.mxu0 0.0
      %1378 = vmatprep.subr.mxu0 0.0
      %1379 = vmatpush1.msra.mxu0 0.0
      %1380 = vmatprep.mubr.f32.mxu0 0.0
      %1381 = vmatmul.mubr.f32.gmra.mrb[0].mxu0 %v1312
      %v1382 = vpop.f32.mrb[0].mxu0
      %v1383 = vadd.f32 0.0, %v1382
      %v1384 = vpop.f32.mrb[0].mxu0
      %v1385 = vadd.f32 0.0, %v1384
      %1386 = vdwg.mxu0
      %1387 = vmatprep.subr.mxu0 %v348
      %1388 = vmatpush1.msra.mxu0 %v347
      %1389 = vmatprep.subr.mxu0 %v353
      %1390 = vmatpush1.msra.mxu0 %v352
      %1391 = vmatprep.subr.mxu0 %v358
      %1392 = vmatpush1.msra.mxu0 %v357
      %1393 = vmatprep.subr.mxu0 %v363
      %1394 = vmatpush1.msra.mxu0 %v362
      %1395 = vmatprep.subr.mxu0 %v368
      %1396 = vmatpush1.msra.mxu0 %v367
      %1397 = vmatprep.subr.mxu0 %v373
      %1398 = vmatpush1.msra.mxu0 %v372
      %1399 = vmatprep.subr.mxu0 %v378
      %1400 = vmatpush1.msra.mxu0 %v377
      %1401 = vmatprep.subr.mxu0 %v383
      %1402 = vmatpush1.msra.mxu0 %v382
      %1403 = vmatprep.subr.mxu0 %v388
      %1404 = vmatpush1.msra.mxu0 %v387
      %1405 = vmatprep.subr.mxu0 %v393
      %1406 = vmatpush1.msra.mxu0 %v392
      %1407 = vmatprep.subr.mxu0 %v398
      %1408 = vmatpush1.msra.mxu0 %v397
      %1409 = vmatprep.subr.mxu0 %v403
      %1410 = vmatpush1.msra.mxu0 %v402
      %1411 = vmatprep.subr.mxu0 %v408
      %1412 = vmatpush1.msra.mxu0 %v407
      %1413 = vmatprep.subr.mxu0 %v413
      %1414 = vmatpush1.msra.mxu0 %v412
      %1415 = vmatprep.subr.mxu0 %v418
      %1416 = vmatpush1.msra.mxu0 %v417
      %1417 = vmatprep.subr.mxu0 %v423
      %1418 = vmatpush1.msra.mxu0 %v422
      %1419 = vmatprep.subr.mxu0 0.0
      %1420 = vmatpush1.msra.mxu0 0.0
      %1421 = vmatprep.subr.mxu0 0.0
      %1422 = vmatpush1.msra.mxu0 0.0
      %1423 = vmatprep.subr.mxu0 0.0
      %1424 = vmatpush1.msra.mxu0 0.0
      %1425 = vmatprep.subr.mxu0 0.0
      %1426 = vmatpush1.msra.mxu0 0.0
      %1427 = vmatprep.subr.mxu0 0.0
      %1428 = vmatpush1.msra.mxu0 0.0
      %1429 = vmatprep.subr.mxu0 0.0
      %1430 = vmatpush1.msra.mxu0 0.0
      %1431 = vmatprep.subr.mxu0 0.0
      %1432 = vmatpush1.msra.mxu0 0.0
      %1433 = vmatprep.subr.mxu0 0.0
      %1434 = vmatpush1.msra.mxu0 0.0
      %1435 = vmatprep.subr.mxu0 0.0
      %1436 = vmatpush1.msra.mxu0 0.0
      %1437 = vmatprep.subr.mxu0 0.0
      %1438 = vmatpush1.msra.mxu0 0.0
      %1439 = vmatprep.subr.mxu0 0.0
      %1440 = vmatpush1.msra.mxu0 0.0
      %1441 = vmatprep.subr.mxu0 0.0
      %1442 = vmatpush1.msra.mxu0 0.0
      %1443 = vmatprep.subr.mxu0 0.0
      %1444 = vmatpush1.msra.mxu0 0.0
      %1445 = vmatprep.subr.mxu0 0.0
      %1446 = vmatpush1.msra.mxu0 0.0
      %1447 = vmatprep.subr.mxu0 0.0
      %1448 = vmatpush1.msra.mxu0 0.0
      %1449 = vmatprep.subr.mxu0 0.0
      %1450 = vmatpush1.msra.mxu0 0.0
      %1451 = vmatprep.mubr.f32.mxu0 0.0
      %1452 = vmatmul.mubr.f32.gmra.mrb[0].mxu0 %v1312
      %v1453 = vpop.f32.mrb[0].mxu0
      %v1454 = vadd.f32 0.0, %v1453
      %v1455 = vpop.f32.mrb[0].mxu0
      %v1456 = vadd.f32 0.0, %v1455
      %1457 = vdwg.mxu0
      %1458 = vmatprep.subr.mxu0 0.0
      %1459 = vmatpush1.msra.mxu0 %v349
      %1460 = vmatprep.subr.mxu0 0.0
      %1461 = vmatpush1.msra.mxu0 %v354
      %1462 = vmatprep.subr.mxu0 0.0
      %1463 = vmatpush1.msra.mxu0 %v359
      %1464 = vmatprep.subr.mxu0 0.0
      %1465 = vmatpush1.msra.mxu0 %v364
      %1466 = vmatprep.subr.mxu0 0.0
      %1467 = vmatpush1.msra.mxu0 %v369
      %1468 = vmatprep.subr.mxu0 0.0
      %1469 = vmatpush1.msra.mxu0 %v374
      %1470 = vmatprep.subr.mxu0 0.0
      %1471 = vmatpush1.msra.mxu0 %v379
      %1472 = vmatprep.subr.mxu0 0.0
      %1473 = vmatpush1.msra.mxu0 %v384
      %1474 = vmatprep.subr.mxu0 0.0
      %1475 = vmatpush1.msra.mxu0 %v389
      %1476 = vmatprep.subr.mxu0 0.0
      %1477 = vmatpush1.msra.mxu0 %v394
      %1478 = vmatprep.subr.mxu0 0.0
      %1479 = vmatpush1.msra.mxu0 %v399
      %1480 = vmatprep.subr.mxu0 0.0
      %1481 = vmatpush1.msra.mxu0 %v404
      %1482 = vmatprep.subr.mxu0 0.0
      %1483 = vmatpush1.msra.mxu0 %v409
      %1484 = vmatprep.subr.mxu0 0.0
      %1485 = vmatpush1.msra.mxu0 %v414
      %1486 = vmatprep.subr.mxu0 0.0
      %1487 = vmatpush1.msra.mxu0 %v419
      %1488 = vmatprep.subr.mxu0 0.0
      %1489 = vmatpush1.msra.mxu0 %v424
      %1490 = vmatprep.subr.mxu0 0.0
      %1491 = vmatpush1.msra.mxu0 0.0
      %1492 = vmatprep.subr.mxu0 0.0
      %1493 = vmatpush1.msra.mxu0 0.0
      %1494 = vmatprep.subr.mxu0 0.0
      %1495 = vmatpush1.msra.mxu0 0.0
      %1496 = vmatprep.subr.mxu0 0.0
      %1497 = vmatpush1.msra.mxu0 0.0
      %1498 = vmatprep.subr.mxu0 0.0
      %1499 = vmatpush1.msra.mxu0 0.0
      %1500 = vmatprep.subr.mxu0 0.0
      %1501 = vmatpush1.msra.mxu0 0.0
      %1502 = vmatprep.subr.mxu0 0.0
      %1503 = vmatpush1.msra.mxu0 0.0
      %1504 = vmatprep.subr.mxu0 0.0
      %1505 = vmatpush1.msra.mxu0 0.0
      %1506 = vmatprep.subr.mxu0 0.0
      %1507 = vmatpush1.msra.mxu0 0.0
      %1508 = vmatprep.subr.mxu0 0.0
      %1509 = vmatpush1.msra.mxu0 0.0
      %1510 = vmatprep.subr.mxu0 0.0
      %1511 = vmatpush1.msra.mxu0 0.0
      %1512 = vmatprep.subr.mxu0 0.0
      %1513 = vmatpush1.msra.mxu0 0.0
      %1514 = vmatprep.subr.mxu0 0.0
      %1515 = vmatpush1.msra.mxu0 0.0
      %1516 = vmatprep.subr.mxu0 0.0
      %1517 = vmatpush1.msra.mxu0 0.0
      %1518 = vmatprep.subr.mxu0 0.0
      %1519 = vmatpush1.msra.mxu0 0.0
      %1520 = vmatprep.subr.mxu0 0.0
      %1521 = vmatpush1.msra.mxu0 0.0
      %1522 = vmatprep.mubr.f32.mxu0 0.0
      %1523 = vmatmul.mubr.f32.gmra.mrb[0].mxu0 %v1312
      %v1524 = vpop.f32.mrb[0].mxu0
      %v1525 = vadd.f32 0.0, %v1524
      %v1526 = vpop.f32.mrb[0].mxu0
      %1527 = vdwg.mxu0
      %v1533 = vcombine.low %v1383, %v1385
      %v1534 = vcombine.low %v1454, %v1456
      %v1536 = vunpack.c.l.s4 1983009808
      %v1537 = vunpack.c.0.s8 %v1536
      %v1538 = vlaneseq
      %v1539 = vshrl.u32 %v1538, 7
      %v1540 = vsub.s32 %v1537, %v1539
      %v1541 = vrot.slane %v1533, %v1540
      %v1543 = vunpack.c.l.s4 1983009808
      %v1544 = vunpack.c.0.s8 %v1543
      %v1545 = vlaneseq
      %v1546 = vshrl.u32 %v1545, 7
      %v1547 = vsub.s32 %v1544, %v1546
      %v1548 = vrot.slane %v1534, %v1547
      %v1549 = vcombine.low %v1541, %v1548
      %v1551 = vunpack.c.l.s4 1983009808
      %v1552 = vunpack.c.0.s8 %v1551
      %v1553 = vlaneseq
      %v1554 = vshrl.u32 %v1553, 7
      %v1555 = vsub.s32 %v1552, %v1554
      %v1556 = vrot.slane %v1525, %v1555
      %v1559 = vadd.f32 %v1314, %v1549
      %v1560 = vadd.f32 %v1315, %v1556
      %v1561 = vxor.u32 %v1559, 2147483648
      %v1562 = vmul.f32 %v1561, 1.442695
      %v1563 = vpow.pop %v1562
      %v1564 = vadd.f32 %v1563, 1.0
      %v1565 = vrcp.pop %v1564
      %v1566 = vmul.f32 1.0, %v1565
      %v1568 = vrot.slane %v1559, 2
      %v1570 = vxor.u32 %v1568, 2147483648
      %v1571 = vmul.f32 %v1570, 1.442695
      %v1572 = vpow.pop %v1571
      %v1573 = vadd.f32 %v1572, 1.0
      %v1574 = vrcp.pop %v1573
      %v1575 = vmul.f32 1.0, %v1574
      %v1576 = vrot.slane %v1559, 4
      %v1578 = vtanh.pop %v1576
      %v1579 = vmul.f32 %v1566, %v1578
      %v1580 = vrot.slane %v1559, 6
      %v1582 = vxor.u32 %v1580, 2147483648
      %v1583 = vmul.f32 %v1582, 1.442695
      %v1584 = vpow.pop %v1583
      %v1585 = vadd.f32 %v1584, 1.0
      %v1586 = vrcp.pop %v1585
      %v1587 = vmul.f32 1.0, %v1586
      %v1588 = vxor.u32 %v1560, 2147483648
      %v1589 = vmul.f32 %v1588, 1.442695
      %v1590 = vpow.pop %v1589
      %v1591 = vadd.f32 %v1590, 1.0
      %v1592 = vrcp.pop %v1591
      %v1593 = vmul.f32 1.0, %v1592
      %v1596 = vunpack.c.l.s4 1966171168
      %v1597 = vunpack.c.0.s8 %v1596
      %v1598 = vlaneseq
      %v1599 = vshrl.u32 %v1598, 7
      %v1600 = vsub.s32 %v1597, %v1599
      %v1601 = vrot.slane %v1575, %v1600
      %v1602 = vcombine.high %v1601, %v1601
      %v1603 = vlaneseq
      %v1604 = vshrl.u32 %v1603, 7
      %v1605 = vsub.s32 0, %v1604
      %v1606 = vrot.slane %v1593, %v1605
      %1608 = vbcast.lane.b32.xlu0 %v1606, 256
      %v1609 = vpop.permute.xlu0 %1608
      %v1610 = vlaneseq
      %v1611 = vshrl.u32 %v1610, 7
      %v1612 = vsub.s32 1, %v1611
      %v1613 = vrot.slane %v1593, %v1612
      %1615 = vbcast.lane.b32.xlu0 %v1613, 256
      %v1616 = vpop.permute.xlu0 %1615
      %v1617 = vlaneseq
      %v1618 = vshrl.u32 %v1617, 7
      %v1619 = vsub.s32 0, %v1618
      %v1620 = vrot.slane %v1601, %v1619
      %v1621 = vlaneseq
      %v1622 = vshrl.u32 %v1621, 7
      %v1623 = vsub.s32 0, %v1622
      %v1624 = vrot.slane %v1602, %v1623
      %v1627 = vmul.f32 %v1620, %v1609
      %v1628 = vmul.f32 %v1624, %v1616
      %v1631 = vunpack.c.l.s4 1966171168
      %v1632 = vunpack.c.0.s8 %v1631
      %v1633 = vlaneseq
      %v1634 = vshrl.u32 %v1633, 7
      %v1635 = vsub.s32 %v1632, %v1634
      %v1636 = vrot.slane %v1579, %v1635
      %v1637 = vcombine.high %v1636, %v1636
      %s1638 = scalar_lea.vmem %s319, 16
      %v1639 = vld [vmem:[%s1638] sm:$0xff]
      %s1640 = scalar_lea.vmem %s325, 16
      %v1641 = vld [vmem:[%s1640] sm:$0xff]
      %v1642 = vld [vmem:[#allocation3] sm:$0xff]
      %v1643 = vld [vmem:[#allocation3 + $0x8] sm:$0xff]
      %v1644 = vmul.f32 %v1627, %v1642
      %v1645 = vmul.f32 %v1628, %v1643
      %v1646 = vlaneseq
      %v1647 = vshrl.u32 %v1646, 7
      %v1648 = vsub.s32 0, %v1647
      %v1649 = vrot.slane %v1636, %v1648
      %v1650 = vlaneseq
      %v1651 = vshrl.u32 %v1650, 7
      %v1652 = vsub.s32 0, %v1651
      %v1653 = vrot.slane %v1637, %v1652
      %1657 = vset.pattern.permute.xlu0 0
      %1658 = vperm.xlu0 %1657, %v1639
      %v1659 = vpop.permute.xlu0 %1658
      %v1661 = vmul.f32 %v1649, %v1659
      %v1662 = vmul.f32 %v1653, %v1659
      %v1663 = vadd.f32 %v1644, %v1661
      %v1664 = vadd.f32 %v1645, %v1662
      %v1665 = vld [vmem:[#allocation4] sm:$0xff]
      %v1666 = vld [vmem:[#allocation4 + $0x8] sm:$0xff]
      %v1667 = vmul.f32 %v1627, %v1665
      %v1668 = vmul.f32 %v1628, %v1666
      %1670 = vset.pattern.permute.xlu0 0
      %1671 = vperm.xlu0 %1670, %v1641
      %v1672 = vpop.permute.xlu0 %1671
      %v1674 = vmul.f32 %v1649, %v1672
      %v1675 = vmul.f32 %v1653, %v1672
      %v1676 = vadd.f32 %v1667, %v1674
      %v1677 = vadd.f32 %v1668, %v1675
      %1678 = vst [vmem:[#allocation3] sm:$0xff] %v1663
      %1679 = vst [vmem:[#allocation3 + $0x8] sm:$0xff] %v1664
      %1680 = vst [vmem:[#allocation4] sm:$0xff] %v1676
      %1681 = vst [vmem:[#allocation4 + $0x8] sm:$0xff] %v1677
      %v1682 = vmul.f32 %v1663, %v1663
      %v1683 = vmul.f32 %v1664, %v1664
      %v1684 = vmul.f32 %v1676, %v1676
      %v1685 = vmul.f32 %v1677, %v1677
      %v1686 = vadd.f32 %v1682, %v1684
      %v1687 = vadd.f32 %v1683, %v1685
      %v1688 = vrsqrt.pop %v1686
      %v1689 = vmul.f32 %v1686, %v1688
      %vm1690 = vcmp.eq.f32.partialorder %v1686, inf
      %v1691 = vsel %vm1690, %v1686, %v1689
      %vm1692 = vcmp.eq.f32.partialorder %v1686, 0.0
      %v1693 = vand.u32 %v1686, 2147483648
      %v1694 = vsel %vm1692, %v1693, %v1691
      %v1695 = vrsqrt.pop %v1687
      %v1696 = vmul.f32 %v1687, %v1695
      %vm1697 = vcmp.eq.f32.partialorder %v1687, inf
      %v1698 = vsel %vm1697, %v1687, %v1696
      %vm1699 = vcmp.eq.f32.partialorder %v1687, 0.0
      %v1700 = vand.u32 %v1687, 2147483648
      %v1701 = vsel %vm1699, %v1700, %v1698
      %v1702 = vmul.f32 %v1694, %v817
      %v1703 = vmul.f32 %v1701, %v817
      %v1704 = vrot.slane %v1702, 4
      %v1705 = vadd.f32 %v1702, %v1704
      %v1706 = vrot.slane %v1705, 2
      %v1707 = vadd.f32 %v1705, %v1706
      %v1708 = vrot.slane %v1707, 1
      %v1709 = vadd.f32 %v1707, %v1708
      %v1710 = vrot.slane %v1703, 4
      %v1711 = vadd.f32 %v1703, %v1710
      %v1712 = vrot.slane %v1711, 2
      %v1713 = vadd.f32 %v1711, %v1712
      %v1714 = vrot.slane %v1713, 1
      %v1715 = vadd.f32 %v1713, %v1714
      %v1716 = vadd.f32 %v1709, %v837
      %v1717 = vadd.f32 %v1715, %v837
      %v1718 = vtanh.pop %v1716
      %v1719 = vtanh.pop %v1717
      %v1723 = vunpack.c.l.s4 1983009808
      %v1724 = vunpack.c.0.s8 %v1723
      %v1725 = vlaneseq
      %v1726 = vshrl.u32 %v1725, 7
      %v1727 = vsub.s32 %v1724, %v1726
      %v1728 = vrot.slane %v1718, %v1727
      %v1730 = vunpack.c.l.s4 1983009808
      %v1731 = vunpack.c.0.s8 %v1730
      %v1732 = vlaneseq
      %v1733 = vshrl.u32 %v1732, 7
      %v1734 = vsub.s32 %v1731, %v1733
      %v1735 = vrot.slane %v1719, %v1734
      %v1736 = vsel %vm859, %v1728, %v1728
      %v1737 = vsel %vm861, %v1728, %v1736
      %v1738 = vrot.slane %v1735, 7
      %v1739 = vsel %vm864, %v1738, %v1737
      %v1740 = vsel %vm866, %v1738, %v1739
      %v1741 = vsel %vm868, %v1738, %v1740
      %v1742 = vsel %vm870, %v1738, %v1741
      %v1744 = vmul.f32 %v1587, %v1742
      %1745 = vst [vmem:[#allocation2] sm:$0x3] %v1744
      %s1746 = scalar_lea.vmem %s334, 4
      %1747 = vst [vmem:[%s1746] sm:$0x3] %v1744
      %v1748 = vld [vmem:[#allocation2] sm:$0x3]
      %s1749 = scalar_lea.vmem %s313, 30
      %v1750 = vld [vmem:[%s1749] sm:$0xff]
      %v1751 = vld [vmem:[%s1749 + $0x8] sm:$0x3]
      %1752 = vmatprep.subr.mxu0 %v346
      %1753 = vmatpush1.msra.mxu0 %v345
      %1754 = vmatprep.subr.mxu0 %v351
      %1755 = vmatpush1.msra.mxu0 %v350
      %1756 = vmatprep.subr.mxu0 %v356
      %1757 = vmatpush1.msra.mxu0 %v355
      %1758 = vmatprep.subr.mxu0 %v361
      %1759 = vmatpush1.msra.mxu0 %v360
      %1760 = vmatprep.subr.mxu0 %v366
      %1761 = vmatpush1.msra.mxu0 %v365
      %1762 = vmatprep.subr.mxu0 %v371
      %1763 = vmatpush1.msra.mxu0 %v370
      %1764 = vmatprep.subr.mxu0 %v376
      %1765 = vmatpush1.msra.mxu0 %v375
      %1766 = vmatprep.subr.mxu0 %v381
      %1767 = vmatpush1.msra.mxu0 %v380
      %1768 = vmatprep.subr.mxu0 %v386
      %1769 = vmatpush1.msra.mxu0 %v385
      %1770 = vmatprep.subr.mxu0 %v391
      %1771 = vmatpush1.msra.mxu0 %v390
      %1772 = vmatprep.subr.mxu0 %v396
      %1773 = vmatpush1.msra.mxu0 %v395
      %1774 = vmatprep.subr.mxu0 %v401
      %1775 = vmatpush1.msra.mxu0 %v400
      %1776 = vmatprep.subr.mxu0 %v406
      %1777 = vmatpush1.msra.mxu0 %v405
      %1778 = vmatprep.subr.mxu0 %v411
      %1779 = vmatpush1.msra.mxu0 %v410
      %1780 = vmatprep.subr.mxu0 %v416
      %1781 = vmatpush1.msra.mxu0 %v415
      %1782 = vmatprep.subr.mxu0 %v421
      %1783 = vmatpush1.msra.mxu0 %v420
      %1784 = vmatprep.subr.mxu0 0.0
      %1785 = vmatpush1.msra.mxu0 0.0
      %1786 = vmatprep.subr.mxu0 0.0
      %1787 = vmatpush1.msra.mxu0 0.0
      %1788 = vmatprep.subr.mxu0 0.0
      %1789 = vmatpush1.msra.mxu0 0.0
      %1790 = vmatprep.subr.mxu0 0.0
      %1791 = vmatpush1.msra.mxu0 0.0
      %1792 = vmatprep.subr.mxu0 0.0
      %1793 = vmatpush1.msra.mxu0 0.0
      %1794 = vmatprep.subr.mxu0 0.0
      %1795 = vmatpush1.msra.mxu0 0.0
      %1796 = vmatprep.subr.mxu0 0.0
      %1797 = vmatpush1.msra.mxu0 0.0
      %1798 = vmatprep.subr.mxu0 0.0
      %1799 = vmatpush1.msra.mxu0 0.0
      %1800 = vmatprep.subr.mxu0 0.0
      %1801 = vmatpush1.msra.mxu0 0.0
      %1802 = vmatprep.subr.mxu0 0.0
      %1803 = vmatpush1.msra.mxu0 0.0
      %1804 = vmatprep.subr.mxu0 0.0
      %1805 = vmatpush1.msra.mxu0 0.0
      %1806 = vmatprep.subr.mxu0 0.0
      %1807 = vmatpush1.msra.mxu0 0.0
      %1808 = vmatprep.subr.mxu0 0.0
      %1809 = vmatpush1.msra.mxu0 0.0
      %1810 = vmatprep.subr.mxu0 0.0
      %1811 = vmatpush1.msra.mxu0 0.0
      %1812 = vmatprep.subr.mxu0 0.0
      %1813 = vmatpush1.msra.mxu0 0.0
      %1814 = vmatprep.subr.mxu0 0.0
      %1815 = vmatpush1.msra.mxu0 0.0
      %1816 = vmatprep.mubr.f32.mxu0 0.0
      %1817 = vmatmul.mubr.f32.gmra.mrb[0].mxu0 %v1748
      %v1818 = vpop.f32.mrb[0].mxu0
      %v1819 = vadd.f32 0.0, %v1818
      %v1820 = vpop.f32.mrb[0].mxu0
      %v1821 = vadd.f32 0.0, %v1820
      %1822 = vdwg.mxu0
      %1823 = vmatprep.subr.mxu0 %v348
      %1824 = vmatpush1.msra.mxu0 %v347
      %1825 = vmatprep.subr.mxu0 %v353
      %1826 = vmatpush1.msra.mxu0 %v352
      %1827 = vmatprep.subr.mxu0 %v358
      %1828 = vmatpush1.msra.mxu0 %v357
      %1829 = vmatprep.subr.mxu0 %v363
      %1830 = vmatpush1.msra.mxu0 %v362
      %1831 = vmatprep.subr.mxu0 %v368
      %1832 = vmatpush1.msra.mxu0 %v367
      %1833 = vmatprep.subr.mxu0 %v373
      %1834 = vmatpush1.msra.mxu0 %v372
      %1835 = vmatprep.subr.mxu0 %v378
      %1836 = vmatpush1.msra.mxu0 %v377
      %1837 = vmatprep.subr.mxu0 %v383
      %1838 = vmatpush1.msra.mxu0 %v382
      %1839 = vmatprep.subr.mxu0 %v388
      %1840 = vmatpush1.msra.mxu0 %v387
      %1841 = vmatprep.subr.mxu0 %v393
      %1842 = vmatpush1.msra.mxu0 %v392
      %1843 = vmatprep.subr.mxu0 %v398
      %1844 = vmatpush1.msra.mxu0 %v397
      %1845 = vmatprep.subr.mxu0 %v403
      %1846 = vmatpush1.msra.mxu0 %v402
      %1847 = vmatprep.subr.mxu0 %v408
      %1848 = vmatpush1.msra.mxu0 %v407
      %1849 = vmatprep.subr.mxu0 %v413
      %1850 = vmatpush1.msra.mxu0 %v412
      %1851 = vmatprep.subr.mxu0 %v418
      %1852 = vmatpush1.msra.mxu0 %v417
      %1853 = vmatprep.subr.mxu0 %v423
      %1854 = vmatpush1.msra.mxu0 %v422
      %1855 = vmatprep.subr.mxu0 0.0
      %1856 = vmatpush1.msra.mxu0 0.0
      %1857 = vmatprep.subr.mxu0 0.0
      %1858 = vmatpush1.msra.mxu0 0.0
      %1859 = vmatprep.subr.mxu0 0.0
      %1860 = vmatpush1.msra.mxu0 0.0
      %1861 = vmatprep.subr.mxu0 0.0
      %1862 = vmatpush1.msra.mxu0 0.0
      %1863 = vmatprep.subr.mxu0 0.0
      %1864 = vmatpush1.msra.mxu0 0.0
      %1865 = vmatprep.subr.mxu0 0.0
      %1866 = vmatpush1.msra.mxu0 0.0
      %1867 = vmatprep.subr.mxu0 0.0
      %1868 = vmatpush1.msra.mxu0 0.0
      %1869 = vmatprep.subr.mxu0 0.0
      %1870 = vmatpush1.msra.mxu0 0.0
      %1871 = vmatprep.subr.mxu0 0.0
      %1872 = vmatpush1.msra.mxu0 0.0
      %1873 = vmatprep.subr.mxu0 0.0
      %1874 = vmatpush1.msra.mxu0 0.0
      %1875 = vmatprep.subr.mxu0 0.0
      %1876 = vmatpush1.msra.mxu0 0.0
      %1877 = vmatprep.subr.mxu0 0.0
      %1878 = vmatpush1.msra.mxu0 0.0
      %1879 = vmatprep.subr.mxu0 0.0
      %1880 = vmatpush1.msra.mxu0 0.0
      %1881 = vmatprep.subr.mxu0 0.0
      %1882 = vmatpush1.msra.mxu0 0.0
      %1883 = vmatprep.subr.mxu0 0.0
      %1884 = vmatpush1.msra.mxu0 0.0
      %1885 = vmatprep.subr.mxu0 0.0
      %1886 = vmatpush1.msra.mxu0 0.0
      %1887 = vmatprep.mubr.f32.mxu0 0.0
      %1888 = vmatmul.mubr.f32.gmra.mrb[0].mxu0 %v1748
      %v1889 = vpop.f32.mrb[0].mxu0
      %v1890 = vadd.f32 0.0, %v1889
      %v1891 = vpop.f32.mrb[0].mxu0
      %v1892 = vadd.f32 0.0, %v1891
      %1893 = vdwg.mxu0
      %1894 = vmatprep.subr.mxu0 0.0
      %1895 = vmatpush1.msra.mxu0 %v349
      %1896 = vmatprep.subr.mxu0 0.0
      %1897 = vmatpush1.msra.mxu0 %v354
      %1898 = vmatprep.subr.mxu0 0.0
      %1899 = vmatpush1.msra.mxu0 %v359
      %1900 = vmatprep.subr.mxu0 0.0
      %1901 = vmatpush1.msra.mxu0 %v364
      %1902 = vmatprep.subr.mxu0 0.0
      %1903 = vmatpush1.msra.mxu0 %v369
      %1904 = vmatprep.subr.mxu0 0.0
      %1905 = vmatpush1.msra.mxu0 %v374
      %1906 = vmatprep.subr.mxu0 0.0
      %1907 = vmatpush1.msra.mxu0 %v379
      %1908 = vmatprep.subr.mxu0 0.0
      %1909 = vmatpush1.msra.mxu0 %v384
      %1910 = vmatprep.subr.mxu0 0.0
      %1911 = vmatpush1.msra.mxu0 %v389
      %1912 = vmatprep.subr.mxu0 0.0
      %1913 = vmatpush1.msra.mxu0 %v394
      %1914 = vmatprep.subr.mxu0 0.0
      %1915 = vmatpush1.msra.mxu0 %v399
      %1916 = vmatprep.subr.mxu0 0.0
      %1917 = vmatpush1.msra.mxu0 %v404
      %1918 = vmatprep.subr.mxu0 0.0
      %1919 = vmatpush1.msra.mxu0 %v409
      %1920 = vmatprep.subr.mxu0 0.0
      %1921 = vmatpush1.msra.mxu0 %v414
      %1922 = vmatprep.subr.mxu0 0.0
      %1923 = vmatpush1.msra.mxu0 %v419
      %1924 = vmatprep.subr.mxu0 0.0
      %1925 = vmatpush1.msra.mxu0 %v424
      %1926 = vmatprep.subr.mxu0 0.0
      %1927 = vmatpush1.msra.mxu0 0.0
      %1928 = vmatprep.subr.mxu0 0.0
      %1929 = vmatpush1.msra.mxu0 0.0
      %1930 = vmatprep.subr.mxu0 0.0
      %1931 = vmatpush1.msra.mxu0 0.0
      %1932 = vmatprep.subr.mxu0 0.0
      %1933 = vmatpush1.msra.mxu0 0.0
      %1934 = vmatprep.subr.mxu0 0.0
      %1935 = vmatpush1.msra.mxu0 0.0
      %1936 = vmatprep.subr.mxu0 0.0
      %1937 = vmatpush1.msra.mxu0 0.0
      %1938 = vmatprep.subr.mxu0 0.0
      %1939 = vmatpush1.msra.mxu0 0.0
      %1940 = vmatprep.subr.mxu0 0.0
      %1941 = vmatpush1.msra.mxu0 0.0
      %1942 = vmatprep.subr.mxu0 0.0
      %1943 = vmatpush1.msra.mxu0 0.0
      %1944 = vmatprep.subr.mxu0 0.0
      %1945 = vmatpush1.msra.mxu0 0.0
      %1946 = vmatprep.subr.mxu0 0.0
      %1947 = vmatpush1.msra.mxu0 0.0
      %1948 = vmatprep.subr.mxu0 0.0
      %1949 = vmatpush1.msra.mxu0 0.0
      %1950 = vmatprep.subr.mxu0 0.0
      %1951 = vmatpush1.msra.mxu0 0.0
      %1952 = vmatprep.subr.mxu0 0.0
      %1953 = vmatpush1.msra.mxu0 0.0
      %1954 = vmatprep.subr.mxu0 0.0
      %1955 = vmatpush1.msra.mxu0 0.0
      %1956 = vmatprep.subr.mxu0 0.0
      %1957 = vmatpush1.msra.mxu0 0.0
      %1958 = vmatprep.mubr.f32.mxu0 0.0
      %1959 = vmatmul.mubr.f32.gmra.mrb[0].mxu0 %v1748
      %v1960 = vpop.f32.mrb[0].mxu0
      %v1961 = vadd.f32 0.0, %v1960
      %v1962 = vpop.f32.mrb[0].mxu0
      %1963 = vdwg.mxu0
      %v1969 = vcombine.low %v1819, %v1821
      %v1970 = vcombine.low %v1890, %v1892
      %v1972 = vunpack.c.l.s4 1983009808
      %v1973 = vunpack.c.0.s8 %v1972
      %v1974 = vlaneseq
      %v1975 = vshrl.u32 %v1974, 7
      %v1976 = vsub.s32 %v1973, %v1975
      %v1977 = vrot.slane %v1969, %v1976
      %v1979 = vunpack.c.l.s4 1983009808
      %v1980 = vunpack.c.0.s8 %v1979
      %v1981 = vlaneseq
      %v1982 = vshrl.u32 %v1981, 7
      %v1983 = vsub.s32 %v1980, %v1982
      %v1984 = vrot.slane %v1970, %v1983
      %v1985 = vcombine.low %v1977, %v1984
      %v1987 = vunpack.c.l.s4 1983009808
      %v1988 = vunpack.c.0.s8 %v1987
      %v1989 = vlaneseq
      %v1990 = vshrl.u32 %v1989, 7
      %v1991 = vsub.s32 %v1988, %v1990
      %v1992 = vrot.slane %v1961, %v1991
      %v1995 = vadd.f32 %v1750, %v1985
      %v1996 = vadd.f32 %v1751, %v1992
      %v1997 = vxor.u32 %v1995, 2147483648
      %v1998 = vmul.f32 %v1997, 1.442695
      %v1999 = vpow.pop %v1998
      %v2000 = vadd.f32 %v1999, 1.0
      %v2001 = vrcp.pop %v2000
      %v2002 = vmul.f32 1.0, %v2001
      %v2004 = vrot.slane %v1995, 2
      %v2006 = vxor.u32 %v2004, 2147483648
      %v2007 = vmul.f32 %v2006, 1.442695
      %v2008 = vpow.pop %v2007
      %v2009 = vadd.f32 %v2008, 1.0
      %v2010 = vrcp.pop %v2009
      %v2011 = vmul.f32 1.0, %v2010
      %v2012 = vrot.slane %v1995, 4
      %v2014 = vtanh.pop %v2012
      %v2015 = vmul.f32 %v2002, %v2014
      %v2016 = vrot.slane %v1995, 6
      %v2018 = vxor.u32 %v2016, 2147483648
      %v2019 = vmul.f32 %v2018, 1.442695
      %v2020 = vpow.pop %v2019
      %v2021 = vadd.f32 %v2020, 1.0
      %v2022 = vrcp.pop %v2021
      %v2023 = vmul.f32 1.0, %v2022
      %v2024 = vxor.u32 %v1996, 2147483648
      %v2025 = vmul.f32 %v2024, 1.442695
      %v2026 = vpow.pop %v2025
      %v2027 = vadd.f32 %v2026, 1.0
      %v2028 = vrcp.pop %v2027
      %v2029 = vmul.f32 1.0, %v2028
      %v2032 = vunpack.c.l.s4 1966171168
      %v2033 = vunpack.c.0.s8 %v2032
      %v2034 = vlaneseq
      %v2035 = vshrl.u32 %v2034, 7
      %v2036 = vsub.s32 %v2033, %v2035
      %v2037 = vrot.slane %v2011, %v2036
      %v2038 = vcombine.high %v2037, %v2037
      %v2039 = vlaneseq
      %v2040 = vshrl.u32 %v2039, 7
      %v2041 = vsub.s32 0, %v2040
      %v2042 = vrot.slane %v2029, %v2041
      %2044 = vbcast.lane.b32.xlu0 %v2042, 256
      %v2045 = vpop.permute.xlu0 %2044
      %v2046 = vlaneseq
      %v2047 = vshrl.u32 %v2046, 7
      %v2048 = vsub.s32 1, %v2047
      %v2049 = vrot.slane %v2029, %v2048
      %2051 = vbcast.lane.b32.xlu0 %v2049, 256
      %v2052 = vpop.permute.xlu0 %2051
      %v2053 = vlaneseq
      %v2054 = vshrl.u32 %v2053, 7
      %v2055 = vsub.s32 0, %v2054
      %v2056 = vrot.slane %v2037, %v2055
      %v2057 = vlaneseq
      %v2058 = vshrl.u32 %v2057, 7
      %v2059 = vsub.s32 0, %v2058
      %v2060 = vrot.slane %v2038, %v2059
      %v2063 = vmul.f32 %v2056, %v2045
      %v2064 = vmul.f32 %v2060, %v2052
      %v2067 = vunpack.c.l.s4 1966171168
      %v2068 = vunpack.c.0.s8 %v2067
      %v2069 = vlaneseq
      %v2070 = vshrl.u32 %v2069, 7
      %v2071 = vsub.s32 %v2068, %v2070
      %v2072 = vrot.slane %v2015, %v2071
      %v2073 = vcombine.high %v2072, %v2072
      %s2074 = scalar_lea.vmem %s319, 24
      %v2075 = vld [vmem:[%s2074] sm:$0xff]
      %s2076 = scalar_lea.vmem %s325, 24
      %v2077 = vld [vmem:[%s2076] sm:$0xff]
      %v2078 = vld [vmem:[#allocation3] sm:$0xff]
      %v2079 = vld [vmem:[#allocation3 + $0x8] sm:$0xff]
      %v2080 = vmul.f32 %v2063, %v2078
      %v2081 = vmul.f32 %v2064, %v2079
      %v2082 = vlaneseq
      %v2083 = vshrl.u32 %v2082, 7
      %v2084 = vsub.s32 0, %v2083
      %v2085 = vrot.slane %v2072, %v2084
      %v2086 = vlaneseq
      %v2087 = vshrl.u32 %v2086, 7
      %v2088 = vsub.s32 0, %v2087
      %v2089 = vrot.slane %v2073, %v2088
      %2093 = vset.pattern.permute.xlu0 0
      %2094 = vperm.xlu0 %2093, %v2075
      %v2095 = vpop.permute.xlu0 %2094
      %v2097 = vmul.f32 %v2085, %v2095
      %v2098 = vmul.f32 %v2089, %v2095
      %v2099 = vadd.f32 %v2080, %v2097
      %v2100 = vadd.f32 %v2081, %v2098
      %v2101 = vld [vmem:[#allocation4] sm:$0xff]
      %v2102 = vld [vmem:[#allocation4 + $0x8] sm:$0xff]
      %v2103 = vmul.f32 %v2063, %v2101
      %v2104 = vmul.f32 %v2064, %v2102
      %2106 = vset.pattern.permute.xlu0 0
      %2107 = vperm.xlu0 %2106, %v2077
      %v2108 = vpop.permute.xlu0 %2107
      %v2110 = vmul.f32 %v2085, %v2108
      %v2111 = vmul.f32 %v2089, %v2108
      %v2112 = vadd.f32 %v2103, %v2110
      %v2113 = vadd.f32 %v2104, %v2111
      %2114 = vst [vmem:[#allocation3] sm:$0xff] %v2099
      %2115 = vst [vmem:[#allocation3 + $0x8] sm:$0xff] %v2100
      %2116 = vst [vmem:[#allocation4] sm:$0xff] %v2112
      %2117 = vst [vmem:[#allocation4 + $0x8] sm:$0xff] %v2113
      %v2118 = vmul.f32 %v2099, %v2099
      %v2119 = vmul.f32 %v2100, %v2100
      %v2120 = vmul.f32 %v2112, %v2112
      %v2121 = vmul.f32 %v2113, %v2113
      %v2122 = vadd.f32 %v2118, %v2120
      %v2123 = vadd.f32 %v2119, %v2121
      %v2124 = vrsqrt.pop %v2122
      %v2125 = vmul.f32 %v2122, %v2124
      %vm2126 = vcmp.eq.f32.partialorder %v2122, inf
      %v2127 = vsel %vm2126, %v2122, %v2125
      %vm2128 = vcmp.eq.f32.partialorder %v2122, 0.0
      %v2129 = vand.u32 %v2122, 2147483648
      %v2130 = vsel %vm2128, %v2129, %v2127
      %v2131 = vrsqrt.pop %v2123
      %v2132 = vmul.f32 %v2123, %v2131
      %vm2133 = vcmp.eq.f32.partialorder %v2123, inf
      %v2134 = vsel %vm2133, %v2123, %v2132
      %vm2135 = vcmp.eq.f32.partialorder %v2123, 0.0
      %v2136 = vand.u32 %v2123, 2147483648
      %v2137 = vsel %vm2135, %v2136, %v2134
      %v2138 = vmul.f32 %v2130, %v817
      %v2139 = vmul.f32 %v2137, %v817
      %v2140 = vrot.slane %v2138, 4
      %v2141 = vadd.f32 %v2138, %v2140
      %v2142 = vrot.slane %v2141, 2
      %v2143 = vadd.f32 %v2141, %v2142
      %v2144 = vrot.slane %v2143, 1
      %v2145 = vadd.f32 %v2143, %v2144
      %v2146 = vrot.slane %v2139, 4
      %v2147 = vadd.f32 %v2139, %v2146
      %v2148 = vrot.slane %v2147, 2
      %v2149 = vadd.f32 %v2147, %v2148
      %v2150 = vrot.slane %v2149, 1
      %v2151 = vadd.f32 %v2149, %v2150
      %v2152 = vadd.f32 %v2145, %v837
      %v2153 = vadd.f32 %v2151, %v837
      %v2154 = vtanh.pop %v2152
      %v2155 = vtanh.pop %v2153
      %v2159 = vunpack.c.l.s4 1983009808
      %v2160 = vunpack.c.0.s8 %v2159
      %v2161 = vlaneseq
      %v2162 = vshrl.u32 %v2161, 7
      %v2163 = vsub.s32 %v2160, %v2162
      %v2164 = vrot.slane %v2154, %v2163
      %v2166 = vunpack.c.l.s4 1983009808
      %v2167 = vunpack.c.0.s8 %v2166
      %v2168 = vlaneseq
      %v2169 = vshrl.u32 %v2168, 7
      %v2170 = vsub.s32 %v2167, %v2169
      %v2171 = vrot.slane %v2155, %v2170
      %v2172 = vsel %vm859, %v2164, %v2164
      %v2173 = vsel %vm861, %v2164, %v2172
      %v2174 = vrot.slane %v2171, 7
      %v2175 = vsel %vm864, %v2174, %v2173
      %v2176 = vsel %vm866, %v2174, %v2175
      %v2177 = vsel %vm868, %v2174, %v2176
      %v2178 = vsel %vm870, %v2174, %v2177
      %v2180 = vmul.f32 %v2023, %v2178
      %2181 = vst [vmem:[#allocation2] sm:$0x3] %v2180
      %s2182 = scalar_lea.vmem %s334, 6
      %2183 = vst [vmem:[%s2182] sm:$0x3] %v2180
      %s2184 = smul.u32 4, %s22
      %p2185 = scmp.lt.s32.totalorder %s2184, 7
      %s2186 = scalar_select %p2185, %s2184, 7
      %p2187 = scmp.lt.s32.totalorder %s21, 0
      %s2188 = scalar_select %p2187, %s21, 0
      %s2189 = sadd.s32 %s2188, %s2186
      %s2190 = smul.addr %s2189, 2
      %s2191 = scalar_lea.vmem %s6, %s2190
      // Predicated region
      $region49: #{sfm_forward.1} parent=43 // pred_check
        %p2192 = pneg %p192
      $region50: #{sfm_forward.1} parent=43 // pred_check_branch
        %2194 = sbr.rel (%p2192) target = $region52
      $region51: #{sfm_forward.1} parent=43 // pred_region
        %s2195 = smul.u32 4, %s22
      $region52: #{sfm_forward.1} parent=43 // pred_fallthru
        _
    $region44: #{sfm_forward.1} parent=5 // pred_fallthru
      _
    %p2196 = scmp.le.s32.totalorder 2, %s12
    // Predicated region
    $region53: #{sfm_forward.1} parent=5 // pred_check
      %p2197 = pneg %p2196
    $region54: #{sfm_forward.1} parent=5 // pred_check_branch
      %2199 = sbr.rel (%p2197) target = $region56
    $region55: #{sfm_forward.1} parent=5 // pred_region
      %s2200 = ssub.s32 %s12, 2
      // Predicated region
      $region57: #{sfm_forward.1} parent=55 // pred_check
        %p2201 = pneg %p198
      $region58: #{sfm_forward.1} parent=55 // pred_check_branch
        %2203 = sbr.rel (%p2201) target = $region60
      $region59: #{sfm_forward.1} parent=55 // pred_region
        %s2204 = smul.u32 4, %s24
        %p2205 = scmp.lt.s32.totalorder %s2204, 7
        %s2206 = scalar_select %p2205, %s2204, 7
        %p2207 = scmp.lt.s32.totalorder %s23, 0
        %s2208 = scalar_select %p2207, %s23, 0
        %s2209 = sadd.s32 %s2208, %s2206
        %s2210 = smul.addr %s2209, 2
        %s2211 = scalar_lea.vmem %s6, %s2210
      $region60: #{sfm_forward.1} parent=55 // pred_fallthru
        _
    $region56: #{sfm_forward.1} parent=5 // pred_fallthru
      _
  $region6: #{sfm_forward.1} parent=0 // loop_footer
    %s16 = sadd.s32 1, %s12
  $region7: #{sfm_forward.1} parent=0 // loop_footer_branch
    %11 = sbr.rel target = $region3
  $region8: #{sfm_forward.1} parent=0 // loop_exit
    _

</llo_original>
